<compile_context>
chip_gen: v7x
topology: tpu7x:2x2x1
jax: 0.10.0
libtpu: 0.0.40
codegen_flags: <defaults>
</compile_context>

<pallas_src>
import math

import jax
import jax.numpy as jnp
from jax.experimental import pallas as pl
from jax.experimental.pallas import tpu as pltpu

# ---- sizes -----------------------------------------------------------------
B = 8          # batch
P = 16         # pos_embedding output dim (per-sample location embedding)
E = 32         # mlp_input_len == location_encoder output dim
MONTHS = (3.0, 6.0, 9.0, 12.0)

# month sin/cos constants (python floats; torch computes them from a constant
# `month` tensor, so folding them into the encoder bias is exact)
_MONTH_SC = tuple(
    (math.sin(m / 12.0 * math.pi * 2.0), math.cos(m / 12.0 * math.pi * 2.0))
    for m in MONTHS
)

_LANE = 128      # lane width: batch is padded to a multiple of this
_MAX_BT = 2048   # max lanes per grid step (keeps the (4E, Bt) slab ~1 MiB)


# ---- kernel ----------------------------------------------------------------
def probe_kernel(pe_wT_ref, pe_bT_ref, le_wT_ref, mbT_ref, mlp_wT_ref,
                 mlp_b_ref, lonlat_ref, out_ref):
    # pe_wT  : (P, 2)    pos_embedding weight, feature-major
    # pe_bT  : (P, 1)    pos_embedding bias (column)
    # le_wT  : (E, P)    location_encoder weight, loc rows only, feature-major
    # mbT    : (E, M)    per-month encoder bias (sin/cos/bias folded), columns
    # mlp_wT : (1, M*E)  linear-probe weight (row), month-major blocks
    # mlp_b  : (1, 1)    linear-probe bias
    # lonlat : (2, Bt)   row 0 = lon, row 1 = lat, batch on lanes
    # out    : (1, Bt)   lane-dense output row
    f32 = jnp.float32
    hi = jax.lax.Precision.HIGHEST

    lon = lonlat_ref[0:1, :]                                   # (1, Bt)
    lat = lonlat_ref[1:2, :]                                   # (1, Bt)

    # pos_embedding: Linear(2 -> P).  K=2 -> two VPU broadcast-FMAs.
    loc_t = (pe_wT_ref[:, 0:1] * lon
             + pe_wT_ref[:, 1:2] * lat
             + pe_bT_ref[...])                                 # (P, Bt)

    # location_encoder shared matmul (the month only changes the bias).
    base_t = jnp.dot(le_wT_ref[...], loc_t,
                     precision=hi, preferred_element_type=f32)  # (E, Bt)

    # per-month encodings, concatenated on the feature (sublane) axis.
    n_months = mbT_ref.shape[1]
    x_t = jnp.concatenate(
        [base_t + mbT_ref[:, m:m + 1] for m in range(n_months)],
        axis=0)                                                # (M*E, Bt)

    # linear probe: (1, M*E) @ (M*E, Bt) + b  -> lane-dense output row.
    out_ref[...] = (jnp.dot(mlp_wT_ref[...], x_t,
                            precision=hi, preferred_element_type=f32)
                    + mlp_b_ref[...])


# ---- host-side parameter prep (batch-independent reshapes only) ------------
def _prep_params(pe_w, pe_b, le_w, le_b, mlp_w, mlp_b):
    f32 = jnp.float32
    pe_w, pe_b, le_w, le_b, mlp_w, mlp_b = (
        jnp.asarray(x, f32) for x in (pe_w, pe_b, le_w, le_b, mlp_w, mlp_b))
    p = pe_w.shape[1]
    e = le_w.shape[1]

    pe_wT = pe_w.T                                   # (P, 2)
    pe_bT = pe_b.reshape(1, p).T                     # (P, 1)
    le_wT = le_w[:p, :].T                            # (E, P)

    sc = jnp.asarray(_MONTH_SC, f32)                 # (M, 2) [sin, cos]
    # per-month encoder bias: sin*W[P] + cos*W[P+1] + b
    mb = (sc[:, 0:1] * le_w[p:p + 1, :]
          + sc[:, 1:2] * le_w[p + 1:p + 2, :]
          + le_b.reshape(1, e))                      # (M, E)
    mbT = mb.T                                       # (E, M)

    mlp_wT = mlp_w.reshape(-1, 1).T                  # (1, M*E)
    mlp_b2 = mlp_b.reshape(1, 1)                     # (1, 1)
    return pe_wT, pe_bT, le_wT, mbT, mlp_wT, mlp_b2


# ---- wrapper ---------------------------------------------------------------
def probe_forward(lonlat, pe_w, pe_b, le_w, le_b, mlp_w, mlp_b):
    batch = lonlat.shape[0]
    pe_wT, pe_bT, le_wT, mbT, mlp_wT, mlp_b2 = _prep_params(
        pe_w, pe_b, le_w, le_b, mlp_w, mlp_b)

    # pad batch up to a lane multiple; tile the lane axis for large batches
    b_pad = max(_LANE, -(-batch // _LANE) * _LANE)
    bt = min(b_pad, _MAX_BT)
    b_pad = -(-b_pad // bt) * bt

    # feature-major layout: batch on lanes (lane-dense loads and stores)
    lonlat_t = jnp.zeros((2, b_pad), jnp.float32)
    lonlat_t = lonlat_t.at[:, :batch].set(lonlat.astype(jnp.float32).T)

    def _full(arr):
        nd = arr.ndim
        return pl.BlockSpec(arr.shape, lambda i, _nd=nd: (0,) * _nd)

    out_t = pl.pallas_call(
        probe_kernel,
        out_shape=jax.ShapeDtypeStruct((1, b_pad), jnp.float32),
        grid=(b_pad // bt,),
        in_specs=[
            _full(pe_wT),                             # (P, 2)
            _full(pe_bT),                             # (P, 1)
            _full(le_wT),                             # (E, P)
            _full(mbT),                               # (E, M)
            _full(mlp_wT),                            # (1, M*E)
            _full(mlp_b2),                            # (1, 1)
            pl.BlockSpec((2, bt), lambda i: (0, i)),  # lon/lat rows
        ],
        out_specs=pl.BlockSpec((1, bt), lambda i: (0, i)),
        compiler_params=pltpu.CompilerParams(
            dimension_semantics=("parallel",)),
    )(pe_wT, pe_bT, le_wT, mbT, mlp_wT, mlp_b2, lonlat_t)

    return out_t[0, :batch].reshape(batch, 1)


# ---- pure-JAX reference (unfused, mirrors the torch forward) ----------------
def probe_reference(lonlat, pe_w, pe_b, le_w, le_b, mlp_w, mlp_b):
    loc = lonlat @ pe_w + pe_b                              # (B,P)
    feats = []
    for s, c in _MONTH_SC:
        lm = jnp.concatenate(
            [loc,
             jnp.full((loc.shape[0], 1), s, loc.dtype),
             jnp.full((loc.shape[0], 1), c, loc.dtype)], axis=-1)
        feats.append(lm @ le_w + le_b)
    x = jnp.concatenate(feats, axis=-1)                     # (B,4E)
    return x @ mlp_w + mlp_b                                # (B,1)


if __name__ == "__main__":
    key = jax.random.PRNGKey(0)
    k_in, k1, k2, k3, k4, k5, k6 = jax.random.split(key, 7)

    # deterministic example input: lonlat (B, 2)
    lonlat = jax.random.uniform(k_in, (B, 2), jnp.float32, minval=-1.0, maxval=1.0)

    # deterministic synthetic parameters
    pe_w = jax.random.normal(k1, (2, P), jnp.float32) * 0.5
    pe_b = jax.random.normal(k2, (1, P), jnp.float32) * 0.1
    le_w = jax.random.normal(k3, (P + 2, E), jnp.float32) * 0.2
    le_b = jax.random.normal(k4, (1, E), jnp.float32) * 0.1
    mlp_w = jax.random.normal(k5, (4 * E, 1), jnp.float32) * 0.1
    mlp_b = jax.random.normal(k6, (1, 1), jnp.float32) * 0.1

    out = probe_forward(lonlat, pe_w, pe_b, le_w, le_b, mlp_w, mlp_b)
    out = jax.block_until_ready(out)

    ref = probe_reference(lonlat, pe_w, pe_b, le_w, le_b, mlp_w, mlp_b)
    assert out.shape == (B, 1) and out.dtype == jnp.float32
    # kernel matmuls run at Precision.HIGHEST; reference uses XLA defaults,
    # so allow a small tolerance.
    assert jnp.allclose(out, ref, atol=1e-3, rtol=1e-3), (out, ref)

    print("KERNEL_OK")
</pallas_src>

<mosaic_0001>
module attributes {stable_mosaic.version = 11 : i64} {
  func.func @probe_kernel(%arg0: i32, %arg1: memref<16x2xf32, #tpu.memory_space<vmem>>, %arg2: memref<16x1xf32, #tpu.memory_space<vmem>>, %arg3: memref<32x16xf32, #tpu.memory_space<vmem>>, %arg4: memref<32x4xf32, #tpu.memory_space<vmem>>, %arg5: memref<1x128xf32, #tpu.memory_space<vmem>>, %arg6: memref<1x1xf32, #tpu.memory_space<vmem>>, %arg7: memref<2x128xf32, #tpu.memory_space<vmem>>, %arg8: memref<1x128xf32, #tpu.memory_space<vmem>>) attributes {dimension_semantics = [#tpu.dimension_semantics<parallel>], iteration_bounds = array<i64: 1>, scalar_prefetch = 0 : i64, scratch_operands = 0 : i64, tpu.core_type = #tpu.core_type<tc>, window_params = [{pipeline_mode = #tpu.pipeline_mode<synchronous>, transform_indices = @transform_0, window_bounds = array<i64: 16, 2>}, {pipeline_mode = #tpu.pipeline_mode<synchronous>, transform_indices = @transform_1, window_bounds = array<i64: 16, 1>}, {pipeline_mode = #tpu.pipeline_mode<synchronous>, transform_indices = @transform_2, window_bounds = array<i64: 32, 16>}, {pipeline_mode = #tpu.pipeline_mode<synchronous>, transform_indices = @transform_3, window_bounds = array<i64: 32, 4>}, {pipeline_mode = #tpu.pipeline_mode<synchronous>, transform_indices = @transform_4, window_bounds = array<i64: 1, 128>}, {pipeline_mode = #tpu.pipeline_mode<synchronous>, transform_indices = @transform_5, window_bounds = array<i64: 1, 1>}, {transform_indices = @transform_6, window_bounds = array<i64: 2, 128>}, {transform_indices = @transform_7, window_bounds = array<i64: 1, 128>}]} {
    %c0 = arith.constant 0 : index
    %c0_0 = arith.constant 0 : index
    %0 = vector.load %arg7[%c0, %c0_0] : memref<2x128xf32, #tpu.memory_space<vmem>>, vector<1x128xf32>
    %c1 = arith.constant 1 : index
    %c0_1 = arith.constant 0 : index
    %1 = vector.load %arg7[%c1, %c0_1] : memref<2x128xf32, #tpu.memory_space<vmem>>, vector<1x128xf32>
    %c0_2 = arith.constant 0 : index
    %c0_3 = arith.constant 0 : index
    %2 = vector.load %arg1[%c0_2, %c0_3] : memref<16x2xf32, #tpu.memory_space<vmem>>, vector<16x1xf32>
    %3 = vector.broadcast %2 : vector<16x1xf32> to vector<16x128xf32>
    %4 = vector.broadcast %0 : vector<1x128xf32> to vector<16x128xf32>
    %5 = arith.mulf %3, %4 : vector<16x128xf32>
    %c0_4 = arith.constant 0 : index
    %c1_5 = arith.constant 1 : index
    %6 = vector.load %arg1[%c0_4, %c1_5] : memref<16x2xf32, #tpu.memory_space<vmem>>, vector<16x1xf32>
    %7 = vector.broadcast %6 : vector<16x1xf32> to vector<16x128xf32>
    %8 = vector.broadcast %1 : vector<1x128xf32> to vector<16x128xf32>
    %9 = arith.mulf %7, %8 : vector<16x128xf32>
    %10 = arith.addf %5, %9 : vector<16x128xf32>
    %c0_6 = arith.constant 0 : index
    %c0_7 = arith.constant 0 : index
    %11 = vector.load %arg2[%c0_6, %c0_7] : memref<16x1xf32, #tpu.memory_space<vmem>>, vector<16x1xf32>
    %12 = vector.broadcast %11 : vector<16x1xf32> to vector<16x128xf32>
    %13 = arith.addf %10, %12 : vector<16x128xf32>
    %c0_8 = arith.constant 0 : index
    %c0_9 = arith.constant 0 : index
    %14 = vector.load %arg3[%c0_8, %c0_9] : memref<32x16xf32, #tpu.memory_space<vmem>>, vector<32x16xf32>
    %cst = arith.constant dense<0.000000e+00> : vector<32x128xf32>
    %15 = tpu.matmul %14, %13, %cst {dimension_numbers = #tpu.dot_dimension_numbers<[1], [0], [0], [1], [0, 0, 1, 1], [], []>, precision = #tpu.contract_precision<fp32>} : vector<32x16xf32>, vector<16x128xf32>, vector<32x128xf32> -> vector<32x128xf32>
    %c0_10 = arith.constant 0 : index
    %c0_11 = arith.constant 0 : index
    %16 = vector.load %arg4[%c0_10, %c0_11] : memref<32x4xf32, #tpu.memory_space<vmem>>, vector<32x1xf32>
    %17 = vector.broadcast %16 : vector<32x1xf32> to vector<32x128xf32>
    %18 = arith.addf %15, %17 : vector<32x128xf32>
    %c0_12 = arith.constant 0 : index
    %c1_13 = arith.constant 1 : index
    %19 = vector.load %arg4[%c0_12, %c1_13] : memref<32x4xf32, #tpu.memory_space<vmem>>, vector<32x1xf32>
    %20 = vector.broadcast %19 : vector<32x1xf32> to vector<32x128xf32>
    %21 = arith.addf %15, %20 : vector<32x128xf32>
    %c0_14 = arith.constant 0 : index
    %c2 = arith.constant 2 : index
    %22 = vector.load %arg4[%c0_14, %c2] : memref<32x4xf32, #tpu.memory_space<vmem>>, vector<32x1xf32>
    %23 = vector.broadcast %22 : vector<32x1xf32> to vector<32x128xf32>
    %24 = arith.addf %15, %23 : vector<32x128xf32>
    %c0_15 = arith.constant 0 : index
    %c3 = arith.constant 3 : index
    %25 = vector.load %arg4[%c0_15, %c3] : memref<32x4xf32, #tpu.memory_space<vmem>>, vector<32x1xf32>
    %26 = vector.broadcast %25 : vector<32x1xf32> to vector<32x128xf32>
    %27 = arith.addf %15, %26 : vector<32x128xf32>
    %28 = tpu.concatenate %18, %21, %24, %27 in 0 : vector<32x128xf32>, vector<32x128xf32>, vector<32x128xf32>, vector<32x128xf32> -> vector<128x128xf32>
    %c0_16 = arith.constant 0 : index
    %c0_17 = arith.constant 0 : index
    %29 = vector.load %arg5[%c0_16, %c0_17] : memref<1x128xf32, #tpu.memory_space<vmem>>, vector<1x128xf32>
    %cst_18 = arith.constant dense<0.000000e+00> : vector<1x128xf32>
    %30 = tpu.matmul %29, %28, %cst_18 {dimension_numbers = #tpu.dot_dimension_numbers<[1], [0], [0], [1], [0, 0, 1, 1], [], []>, precision = #tpu.contract_precision<fp32>} : vector<1x128xf32>, vector<128x128xf32>, vector<1x128xf32> -> vector<1x128xf32>
    %c0_19 = arith.constant 0 : index
    %c0_20 = arith.constant 0 : index
    %31 = vector.load %arg6[%c0_19, %c0_20] : memref<1x1xf32, #tpu.memory_space<vmem>>, vector<1x1xf32>
    %32 = vector.broadcast %31 : vector<1x1xf32> to vector<1x128xf32>
    %33 = arith.addf %30, %32 : vector<1x128xf32>
    %c0_21 = arith.constant 0 : index
    %c0_22 = arith.constant 0 : index
    %34 = vector.load %arg8[%c0_21, %c0_22] : memref<1x128xf32, #tpu.memory_space<vmem>>, vector<1x128xf32>
    tpu.vector_store %arg8[%c0_21, %c0_22], %33 {strides = array<i32>} : memref<1x128xf32, #tpu.memory_space<vmem>>, vector<1x128xf32>,
    return
  }
  func.func @transform_0(%arg0: i32) -> (i32, i32) {
    %c0_i32 = arith.constant 0 : i32
    %c0_i32_0 = arith.constant 0 : i32
    %c0_i32_1 = arith.constant 0 : i32
    return %c0_i32, %c0_i32_0 : i32, i32
  }
  func.func @transform_1(%arg0: i32) -> (i32, i32) {
    %c0_i32 = arith.constant 0 : i32
    %c0_i32_0 = arith.constant 0 : i32
    %c0_i32_1 = arith.constant 0 : i32
    return %c0_i32, %c0_i32_0 : i32, i32
  }
  func.func @transform_2(%arg0: i32) -> (i32, i32) {
    %c0_i32 = arith.constant 0 : i32
    %c0_i32_0 = arith.constant 0 : i32
    %c0_i32_1 = arith.constant 0 : i32
    return %c0_i32, %c0_i32_0 : i32, i32
  }
  func.func @transform_3(%arg0: i32) -> (i32, i32) {
    %c0_i32 = arith.constant 0 : i32
    %c0_i32_0 = arith.constant 0 : i32
    %c0_i32_1 = arith.constant 0 : i32
    return %c0_i32, %c0_i32_0 : i32, i32
  }
  func.func @transform_4(%arg0: i32) -> (i32, i32) {
    %c0_i32 = arith.constant 0 : i32
    %c0_i32_0 = arith.constant 0 : i32
    %c0_i32_1 = arith.constant 0 : i32
    return %c0_i32, %c0_i32_0 : i32, i32
  }
  func.func @transform_5(%arg0: i32) -> (i32, i32) {
    %c0_i32 = arith.constant 0 : i32
    %c0_i32_0 = arith.constant 0 : i32
    %c0_i32_1 = arith.constant 0 : i32
    return %c0_i32, %c0_i32_0 : i32, i32
  }
  func.func @transform_6(%arg0: i32) -> (i32, i32) {
    %c0_i32 = arith.constant 0 : i32
    %c0_i32_0 = arith.constant 0 : i32
    return %c0_i32, %arg0 : i32, i32
  }
  func.func @transform_7(%arg0: i32) -> (i32, i32) {
    %c0_i32 = arith.constant 0 : i32
    %c0_i32_0 = arith.constant 0 : i32
    return %c0_i32, %arg0 : i32, i32
  }
}

</mosaic_0001>

<llo_original>
// kernel: tpu_custom_call.1
$region0: #{tpu_custom_call.1}
  #allocation0 [shape = 'u32[]', space=smem, size = 0x4, offset = 0x4, fixed_abs, tag = 'smem constant byte address 0x4 - core index']
  #allocation1 [shape = 'u32[144,128]{1,0:T(1,128)}', space=vmem, size = 0x12000, scoped, tag = 'internal scratch']
  #allocation2 [shape = 'f32[1,1]{1,0:T(1,128)S(1)}', space=vmem, size = 0x200, scoped, tag = 'scoped memory for tpu_custom_call.1']
  %s0 = inlined_call_operand.vmem [shape: f32[16,2], index: 0, kind: input, shape index: {}]
  %s1 = inlined_call_operand.vmem [shape: f32[16,1], index: 1, kind: input, shape index: {}]
  %s2 = inlined_call_operand.vmem [shape: f32[32,16], index: 2, kind: input, shape index: {}]
  %s3 = inlined_call_operand.vmem [shape: f32[32,4], index: 3, kind: input, shape index: {}]
  %s4 = inlined_call_operand.vmem [shape: f32[1,128], index: 4, kind: input, shape index: {}]
  %s5 = inlined_call_operand.<no memory space> [shape: f32[1,1], index: 5, kind: input, shape index: {}]
  %s6 = inlined_call_operand.vmem [shape: f32[2,128], index: 6, kind: input, shape index: {}]
  %s7 = inlined_call_operand.hbm [shape: f32[1,128], index: 7, kind: output, shape index: {}]
  %s8 = sld [smem:[#allocation0]]
  $region38: #{tpu_custom_call.1} parent=0
    _
  %s10 = ssub.s32 1, %s8
  %s11 = scalar_select 0, %s10, %s8
  %v12 = vstv %s5
  %13 = vst [vmem:[#allocation2] sm:$0x1] %v12
  $region1: #{tpu_custom_call.1} parent=0
    #allocation3 [shape = 'u8[512]{0}', space=vmem, size = 0x400, scoped, tag = 'output window, operand 0, single buffered']
    #allocation4 [shape = 's32[1]{0}', space=sflag, size = 0x4, scoped, tag = 'scoped memory for tpu_custom_call.1']
    %14 = vsyncpa [#allocation4], 0
    // Predicated region
    $region2: #{tpu_custom_call.1} parent=1 // pred_check
      _
    $region3: #{tpu_custom_call.1} parent=1 // pred_check_branch
      %16 = sbr.rel (0) target = $region5
    $region4: #{tpu_custom_call.1} parent=1 // pred_region
      _
    $region5: #{tpu_custom_call.1} parent=1 // pred_fallthru
      _
    // Predicated region
    $region6: #{tpu_custom_call.1} parent=1 // pred_check
      _
    $region7: #{tpu_custom_call.1} parent=1 // pred_check_branch
      %18 = sbr.rel (0) target = $region9
    $region8: #{tpu_custom_call.1} parent=1 // pred_region
      _
    $region9: #{tpu_custom_call.1} parent=1 // pred_fallthru
      _
    // Predicated region
    $region10: #{tpu_custom_call.1} parent=1 // pred_check
      _
    $region11: #{tpu_custom_call.1} parent=1 // pred_check_branch
      %20 = sbr.rel (0) target = $region13
    $region12: #{tpu_custom_call.1} parent=1 // pred_region
      _
    $region13: #{tpu_custom_call.1} parent=1 // pred_fallthru
      _
    // Predicated region
    $region14: #{tpu_custom_call.1} parent=1 // pred_check
      _
    $region15: #{tpu_custom_call.1} parent=1 // pred_check_branch
      %22 = sbr.rel (0) target = $region17
    $region16: #{tpu_custom_call.1} parent=1 // pred_region
      _
    $region17: #{tpu_custom_call.1} parent=1 // pred_fallthru
      _
    // Predicated region
    $region18: #{tpu_custom_call.1} parent=1 // pred_check
      _
    $region19: #{tpu_custom_call.1} parent=1 // pred_check_branch
      %24 = sbr.rel (0) target = $region21
    $region20: #{tpu_custom_call.1} parent=1 // pred_region
      _
    $region21: #{tpu_custom_call.1} parent=1 // pred_fallthru
      _
    // Predicated region
    $region22: #{tpu_custom_call.1} parent=1 // pred_check
      _
    $region23: #{tpu_custom_call.1} parent=1 // pred_check_branch
      %26 = sbr.rel (0) target = $region25
    $region24: #{tpu_custom_call.1} parent=1 // pred_region
      _
    $region25: #{tpu_custom_call.1} parent=1 // pred_fallthru
      _
    // Predicated region
    $region26: #{tpu_custom_call.1} parent=1 // pred_check
      _
    $region27: #{tpu_custom_call.1} parent=1 // pred_check_branch
      %28 = sbr.rel (0) target = $region29
    $region28: #{tpu_custom_call.1} parent=1 // pred_region
      _
    $region29: #{tpu_custom_call.1} parent=1 // pred_fallthru
      _
    %v29 = vld [vmem:[%s6] sm:$0x1]
    %v30 = vld [vmem:[%s6 + $0x1] sm:$0x1]
    %v31 = vld [vmem:[%s0] sm:$0xff]
    %v32 = vld [vmem:[%s0 + $0x8] sm:$0xff]
    %34 = vset.pattern.permute.xlu0 0
    %35 = vperm.xlu0 %34, %v31
    %v36 = vpop.permute.xlu0 %35
    %39 = vset.pattern.permute.xlu0 0
    %40 = vperm.xlu0 %39, %v32
    %v41 = vpop.permute.xlu0 %40
    %v43 = vlaneseq
    %v44 = vshrl.u32 %v43, 7
    %v45 = vsub.s32 0, %v44
    %v46 = vrot.slane %v29, %v45
    %v47 = vmul.f32 %v36, %v46
    %v48 = vmul.f32 %v41, %v46
    %49 = vset.pattern.permute.xlu0 1
    %50 = vperm.xlu0 %49, %v31
    %v51 = vpop.permute.xlu0 %50
    %53 = vset.pattern.permute.xlu0 1
    %54 = vperm.xlu0 %53, %v32
    %v55 = vpop.permute.xlu0 %54
    %v57 = vlaneseq
    %v58 = vshrl.u32 %v57, 7
    %v59 = vsub.s32 0, %v58
    %v60 = vrot.slane %v30, %v59
    %v61 = vmul.f32 %v51, %v60
    %v62 = vmul.f32 %v55, %v60
    %v63 = vadd.f32 %v47, %v61
    %v64 = vadd.f32 %v48, %v62
    %v65 = vld [vmem:[%s1] sm:$0xff]
    %v66 = vld [vmem:[%s1 + $0x8] sm:$0xff]
    %68 = vset.pattern.permute.xlu0 0
    %69 = vperm.xlu0 %68, %v65
    %v70 = vpop.permute.xlu0 %69
    %73 = vset.pattern.permute.xlu0 0
    %74 = vperm.xlu0 %73, %v66
    %v75 = vpop.permute.xlu0 %74
    %v77 = vadd.f32 %v63, %v70
    %v78 = vadd.f32 %v64, %v75
    %v79 = vld [vmem:[%s2] sm:$0xff]
    %v80 = vld [vmem:[%s2 + $0x8] sm:$0xff]
    %v81 = vld [vmem:[%s2 + $0x10] sm:$0xff]
    %v82 = vld [vmem:[%s2 + $0x18] sm:$0xff]
    %vm83 = vcmask 130048
    %v85 = vsel %vm83, %v79, 0
    %v88 = vsel %vm83, %v80, 0
    %v91 = vsel %vm83, %v81, 0
    %v94 = vsel %vm83, %v82, 0
    %96 = vmatprep.subr.mxu0 0.0
    %v97 = vand.u32 %v77, 4294901760
    %98 = vmatpush1.msra.mxu0 %v97
    %99 = vmatprep.subr.mxu0 0.0
    %v100 = vand.u32 %v78, 4294901760
    %101 = vmatpush1.msra.mxu0 %v100
    %102 = vmatprep.subr.mxu0 0.0
    %103 = vmatpush1.msra.mxu0 0.0
    %104 = vmatprep.subr.mxu0 0.0
    %105 = vmatpush1.msra.mxu0 0.0
    %106 = vmatprep.subr.mxu0 0.0
    %107 = vmatpush1.msra.mxu0 0.0
    %108 = vmatprep.subr.mxu0 0.0
    %109 = vmatpush1.msra.mxu0 0.0
    %110 = vmatprep.subr.mxu0 0.0
    %111 = vmatpush1.msra.mxu0 0.0
    %112 = vmatprep.subr.mxu0 0.0
    %113 = vmatpush1.msra.mxu0 0.0
    %114 = vmatprep.subr.mxu0 0.0
    %115 = vmatpush1.msra.mxu0 0.0
    %116 = vmatprep.subr.mxu0 0.0
    %117 = vmatpush1.msra.mxu0 0.0
    %118 = vmatprep.subr.mxu0 0.0
    %119 = vmatpush1.msra.mxu0 0.0
    %120 = vmatprep.subr.mxu0 0.0
    %121 = vmatpush1.msra.mxu0 0.0
    %122 = vmatprep.subr.mxu0 0.0
    %123 = vmatpush1.msra.mxu0 0.0
    %124 = vmatprep.subr.mxu0 0.0
    %125 = vmatpush1.msra.mxu0 0.0
    %126 = vmatprep.subr.mxu0 0.0
    %127 = vmatpush1.msra.mxu0 0.0
    %128 = vmatprep.subr.mxu0 0.0
    %129 = vmatpush1.msra.mxu0 0.0
    %130 = vmatprep.subr.mxu0 0.0
    %131 = vmatpush1.msra.mxu0 0.0
    %132 = vmatprep.subr.mxu0 0.0
    %133 = vmatpush1.msra.mxu0 0.0
    %134 = vmatprep.subr.mxu0 0.0
    %135 = vmatpush1.msra.mxu0 0.0
    %136 = vmatprep.subr.mxu0 0.0
    %137 = vmatpush1.msra.mxu0 0.0
    %138 = vmatprep.subr.mxu0 0.0
    %139 = vmatpush1.msra.mxu0 0.0
    %140 = vmatprep.subr.mxu0 0.0
    %141 = vmatpush1.msra.mxu0 0.0
    %142 = vmatprep.subr.mxu0 0.0
    %143 = vmatpush1.msra.mxu0 0.0
    %144 = vmatprep.subr.mxu0 0.0
    %145 = vmatpush1.msra.mxu0 0.0
    %146 = vmatprep.subr.mxu0 0.0
    %147 = vmatpush1.msra.mxu0 0.0
    %148 = vmatprep.subr.mxu0 0.0
    %149 = vmatpush1.msra.mxu0 0.0
    %150 = vmatprep.subr.mxu0 0.0
    %151 = vmatpush1.msra.mxu0 0.0
    %152 = vmatprep.subr.mxu0 0.0
    %153 = vmatpush1.msra.mxu0 0.0
    %154 = vmatprep.subr.mxu0 0.0
    %155 = vmatpush1.msra.mxu0 0.0
    %156 = vmatprep.subr.mxu0 0.0
    %157 = vmatpush1.msra.mxu0 0.0
    %158 = vmatprep.subr.mxu0 0.0
    %159 = vmatpush1.msra.mxu0 0.0
    %160 = vmatprep.subr.mxu0 0.0
    %161 = vmatpush1.msra.mxu0 0.0
    %162 = vmatprep.mubr.f32.mxu0 0.0
    %v163 = vand.u32 %v85, 4294901760
    %v164 = vsub.f32 %v85, %v163
    %v165 = vand.u32 %v164, 4294901760
    %v166 = vsub.f32 %v164, %v165
    %v167 = vand.u32 %v166, 4294901760
    %168 = vmatmul.mubr.f32.gmra.mrb[0].mxu0 %v167
    %v169 = vpop.f32.mrb[0].mxu0
    %v170 = vadd.f32 0.0, %v169
    %v171 = vpop.f32.mrb[0].mxu0
    %172 = vmatprep.mubr.f32.mxu0 0.0
    %v173 = vand.u32 %v88, 4294901760
    %v174 = vsub.f32 %v88, %v173
    %v175 = vand.u32 %v174, 4294901760
    %v176 = vsub.f32 %v174, %v175
    %v177 = vand.u32 %v176, 4294901760
    %178 = vmatmul.mubr.f32.gmra.mrb[0].mxu0 %v177
    %v179 = vpop.f32.mrb[0].mxu0
    %v180 = vadd.f32 0.0, %v179
    %v181 = vpop.f32.mrb[0].mxu0
    %182 = vmatprep.mubr.f32.mxu0 0.0
    %v183 = vand.u32 %v91, 4294901760
    %v184 = vsub.f32 %v91, %v183
    %v185 = vand.u32 %v184, 4294901760
    %v186 = vsub.f32 %v184, %v185
    %v187 = vand.u32 %v186, 4294901760
    %188 = vmatmul.mubr.f32.gmra.mrb[0].mxu0 %v187
    %v189 = vpop.f32.mrb[0].mxu0
    %v190 = vadd.f32 0.0, %v189
    %v191 = vpop.f32.mrb[0].mxu0
    %192 = vmatprep.mubr.f32.mxu0 0.0
    %v193 = vand.u32 %v94, 4294901760
    %v194 = vsub.f32 %v94, %v193
    %v195 = vand.u32 %v194, 4294901760
    %v196 = vsub.f32 %v194, %v195
    %v197 = vand.u32 %v196, 4294901760
    %198 = vmatmul.mubr.f32.gmra.mrb[0].mxu0 %v197
    %v199 = vpop.f32.mrb[0].mxu0
    %v200 = vadd.f32 0.0, %v199
    %v201 = vpop.f32.mrb[0].mxu0
    %202 = vdwg.mxu0
    %203 = vmatprep.subr.mxu0 0.0
    %v204 = vand.u32 %v77, 4294901760
    %v205 = vsub.f32 %v77, %v204
    %v206 = vand.u32 %v205, 4294901760
    %v207 = vsub.f32 %v205, %v206
    %v208 = vand.u32 %v207, 4294901760
    %209 = vmatpush1.msra.mxu0 %v208
    %210 = vmatprep.subr.mxu0 0.0
    %v211 = vand.u32 %v78, 4294901760
    %v212 = vsub.f32 %v78, %v211
    %v213 = vand.u32 %v212, 4294901760
    %v214 = vsub.f32 %v212, %v213
    %v215 = vand.u32 %v214, 4294901760
    %216 = vmatpush1.msra.mxu0 %v215
    %217 = vmatprep.subr.mxu0 0.0
    %218 = vmatpush1.msra.mxu0 0.0
    %219 = vmatprep.subr.mxu0 0.0
    %220 = vmatpush1.msra.mxu0 0.0
    %221 = vmatprep.subr.mxu0 0.0
    %222 = vmatpush1.msra.mxu0 0.0
    %223 = vmatprep.subr.mxu0 0.0
    %224 = vmatpush1.msra.mxu0 0.0
    %225 = vmatprep.subr.mxu0 0.0
    %226 = vmatpush1.msra.mxu0 0.0
    %227 = vmatprep.subr.mxu0 0.0
    %228 = vmatpush1.msra.mxu0 0.0
    %229 = vmatprep.subr.mxu0 0.0
    %230 = vmatpush1.msra.mxu0 0.0
    %231 = vmatprep.subr.mxu0 0.0
    %232 = vmatpush1.msra.mxu0 0.0
    %233 = vmatprep.subr.mxu0 0.0
    %234 = vmatpush1.msra.mxu0 0.0
    %235 = vmatprep.subr.mxu0 0.0
    %236 = vmatpush1.msra.mxu0 0.0
    %237 = vmatprep.subr.mxu0 0.0
    %238 = vmatpush1.msra.mxu0 0.0
    %239 = vmatprep.subr.mxu0 0.0
    %240 = vmatpush1.msra.mxu0 0.0
    %241 = vmatprep.subr.mxu0 0.0
    %242 = vmatpush1.msra.mxu0 0.0
    %243 = vmatprep.subr.mxu0 0.0
    %244 = vmatpush1.msra.mxu0 0.0
    %245 = vmatprep.subr.mxu0 0.0
    %246 = vmatpush1.msra.mxu0 0.0
    %247 = vmatprep.subr.mxu0 0.0
    %248 = vmatpush1.msra.mxu0 0.0
    %249 = vmatprep.subr.mxu0 0.0
    %250 = vmatpush1.msra.mxu0 0.0
    %251 = vmatprep.subr.mxu0 0.0
    %252 = vmatpush1.msra.mxu0 0.0
    %253 = vmatprep.subr.mxu0 0.0
    %254 = vmatpush1.msra.mxu0 0.0
    %255 = vmatprep.subr.mxu0 0.0
    %256 = vmatpush1.msra.mxu0 0.0
    %257 = vmatprep.subr.mxu0 0.0
    %258 = vmatpush1.msra.mxu0 0.0
    %259 = vmatprep.subr.mxu0 0.0
    %260 = vmatpush1.msra.mxu0 0.0
    %261 = vmatprep.subr.mxu0 0.0
    %262 = vmatpush1.msra.mxu0 0.0
    %263 = vmatprep.subr.mxu0 0.0
    %264 = vmatpush1.msra.mxu0 0.0
    %265 = vmatprep.subr.mxu0 0.0
    %266 = vmatpush1.msra.mxu0 0.0
    %267 = vmatprep.subr.mxu0 0.0
    %268 = vmatpush1.msra.mxu0 0.0
    %269 = vmatprep.subr.mxu0 0.0
    %270 = vmatpush1.msra.mxu0 0.0
    %271 = vmatprep.subr.mxu0 0.0
    %272 = vmatpush1.msra.mxu0 0.0
    %273 = vmatprep.subr.mxu0 0.0
    %274 = vmatpush1.msra.mxu0 0.0
    %275 = vmatprep.subr.mxu0 0.0
    %276 = vmatpush1.msra.mxu0 0.0
    %277 = vmatprep.mubr.f32.mxu0 0.0
    %v278 = vand.u32 %v85, 4294901760
    %279 = vmatmul.mubr.f32.gmra.mrb[0].mxu0 %v278
    %v280 = vpop.f32.mrb[0].mxu0
    %v281 = vadd.f32 %v170, %v280
    %v282 = vpop.f32.mrb[0].mxu0
    %283 = vmatprep.mubr.f32.mxu0 0.0
    %v284 = vand.u32 %v88, 4294901760
    %285 = vmatmul.mubr.f32.gmra.mrb[0].mxu0 %v284
    %v286 = vpop.f32.mrb[0].mxu0
    %v287 = vadd.f32 %v180, %v286
    %v288 = vpop.f32.mrb[0].mxu0
    %289 = vmatprep.mubr.f32.mxu0 0.0
    %v290 = vand.u32 %v91, 4294901760
    %291 = vmatmul.mubr.f32.gmra.mrb[0].mxu0 %v290
    %v292 = vpop.f32.mrb[0].mxu0
    %v293 = vadd.f32 %v190, %v292
    %v294 = vpop.f32.mrb[0].mxu0
    %295 = vmatprep.mubr.f32.mxu0 0.0
    %v296 = vand.u32 %v94, 4294901760
    %297 = vmatmul.mubr.f32.gmra.mrb[0].mxu0 %v296
    %v298 = vpop.f32.mrb[0].mxu0
    %v299 = vadd.f32 %v200, %v298
    %v300 = vpop.f32.mrb[0].mxu0
    %301 = vdwg.mxu0
    %302 = vmatprep.subr.mxu0 0.0
    %v303 = vand.u32 %v77, 4294901760
    %v304 = vsub.f32 %v77, %v303
    %305 = vmatpush1.msra.mxu0 %v304
    %306 = vmatprep.subr.mxu0 0.0
    %v307 = vand.u32 %v78, 4294901760
    %v308 = vsub.f32 %v78, %v307
    %309 = vmatpush1.msra.mxu0 %v308
    %310 = vmatprep.subr.mxu0 0.0
    %311 = vmatpush1.msra.mxu0 0.0
    %312 = vmatprep.subr.mxu0 0.0
    %313 = vmatpush1.msra.mxu0 0.0
    %314 = vmatprep.subr.mxu0 0.0
    %315 = vmatpush1.msra.mxu0 0.0
    %316 = vmatprep.subr.mxu0 0.0
    %317 = vmatpush1.msra.mxu0 0.0
    %318 = vmatprep.subr.mxu0 0.0
    %319 = vmatpush1.msra.mxu0 0.0
    %320 = vmatprep.subr.mxu0 0.0
    %321 = vmatpush1.msra.mxu0 0.0
    %322 = vmatprep.subr.mxu0 0.0
    %323 = vmatpush1.msra.mxu0 0.0
    %324 = vmatprep.subr.mxu0 0.0
    %325 = vmatpush1.msra.mxu0 0.0
    %326 = vmatprep.subr.mxu0 0.0
    %327 = vmatpush1.msra.mxu0 0.0
    %328 = vmatprep.subr.mxu0 0.0
    %329 = vmatpush1.msra.mxu0 0.0
    %330 = vmatprep.subr.mxu0 0.0
    %331 = vmatpush1.msra.mxu0 0.0
    %332 = vmatprep.subr.mxu0 0.0
    %333 = vmatpush1.msra.mxu0 0.0
    %334 = vmatprep.subr.mxu0 0.0
    %335 = vmatpush1.msra.mxu0 0.0
    %336 = vmatprep.subr.mxu0 0.0
    %337 = vmatpush1.msra.mxu0 0.0
    %338 = vmatprep.subr.mxu0 0.0
    %339 = vmatpush1.msra.mxu0 0.0
    %340 = vmatprep.subr.mxu0 0.0
    %341 = vmatpush1.msra.mxu0 0.0
    %342 = vmatprep.subr.mxu0 0.0
    %343 = vmatpush1.msra.mxu0 0.0
    %344 = vmatprep.subr.mxu0 0.0
    %345 = vmatpush1.msra.mxu0 0.0
    %346 = vmatprep.subr.mxu0 0.0
    %347 = vmatpush1.msra.mxu0 0.0
    %348 = vmatprep.subr.mxu0 0.0
    %349 = vmatpush1.msra.mxu0 0.0
    %350 = vmatprep.subr.mxu0 0.0
    %351 = vmatpush1.msra.mxu0 0.0
    %352 = vmatprep.subr.mxu0 0.0
    %353 = vmatpush1.msra.mxu0 0.0
    %354 = vmatprep.subr.mxu0 0.0
    %355 = vmatpush1.msra.mxu0 0.0
    %356 = vmatprep.subr.mxu0 0.0
    %357 = vmatpush1.msra.mxu0 0.0
    %358 = vmatprep.subr.mxu0 0.0
    %359 = vmatpush1.msra.mxu0 0.0
    %360 = vmatprep.subr.mxu0 0.0
    %361 = vmatpush1.msra.mxu0 0.0
    %362 = vmatprep.subr.mxu0 0.0
    %363 = vmatpush1.msra.mxu0 0.0
    %364 = vmatprep.subr.mxu0 0.0
    %365 = vmatpush1.msra.mxu0 0.0
    %366 = vmatprep.subr.mxu0 0.0
    %367 = vmatpush1.msra.mxu0 0.0
    %368 = vmatprep.subr.mxu0 0.0
    %369 = vmatpush1.msra.mxu0 0.0
    %370 = vmatprep.mubr.f32.mxu0 0.0
    %v371 = vand.u32 %v85, 4294901760
    %v372 = vsub.f32 %v85, %v371
    %373 = vmatmul.mubr.f32.gmra.mrb[0].mxu0 %v372
    %v374 = vpop.f32.mrb[0].mxu0
    %v375 = vadd.f32 %v281, %v374
    %v376 = vpop.f32.mrb[0].mxu0
    %377 = vmatprep.mubr.f32.mxu0 0.0
    %v378 = vand.u32 %v88, 4294901760
    %v379 = vsub.f32 %v88, %v378
    %380 = vmatmul.mubr.f32.gmra.mrb[0].mxu0 %v379
    %v381 = vpop.f32.mrb[0].mxu0
    %v382 = vadd.f32 %v287, %v381
    %v383 = vpop.f32.mrb[0].mxu0
    %384 = vmatprep.mubr.f32.mxu0 0.0
    %v385 = vand.u32 %v91, 4294901760
    %v386 = vsub.f32 %v91, %v385
    %387 = vmatmul.mubr.f32.gmra.mrb[0].mxu0 %v386
    %v388 = vpop.f32.mrb[0].mxu0
    %v389 = vadd.f32 %v293, %v388
    %v390 = vpop.f32.mrb[0].mxu0
    %391 = vmatprep.mubr.f32.mxu0 0.0
    %v392 = vand.u32 %v94, 4294901760
    %v393 = vsub.f32 %v94, %v392
    %394 = vmatmul.mubr.f32.gmra.mrb[0].mxu0 %v393
    %v395 = vpop.f32.mrb[0].mxu0
    %v396 = vadd.f32 %v299, %v395
    %v397 = vpop.f32.mrb[0].mxu0
    %398 = vdwg.mxu0
    %399 = vmatprep.subr.mxu0 0.0
    %v400 = vand.u32 %v77, 4294901760
    %401 = vmatpush1.msra.mxu0 %v400
    %402 = vmatprep.subr.mxu0 0.0
    %v403 = vand.u32 %v78, 4294901760
    %404 = vmatpush1.msra.mxu0 %v403
    %405 = vmatprep.subr.mxu0 0.0
    %406 = vmatpush1.msra.mxu0 0.0
    %407 = vmatprep.subr.mxu0 0.0
    %408 = vmatpush1.msra.mxu0 0.0
    %409 = vmatprep.subr.mxu0 0.0
    %410 = vmatpush1.msra.mxu0 0.0
    %411 = vmatprep.subr.mxu0 0.0
    %412 = vmatpush1.msra.mxu0 0.0
    %413 = vmatprep.subr.mxu0 0.0
    %414 = vmatpush1.msra.mxu0 0.0
    %415 = vmatprep.subr.mxu0 0.0
    %416 = vmatpush1.msra.mxu0 0.0
    %417 = vmatprep.subr.mxu0 0.0
    %418 = vmatpush1.msra.mxu0 0.0
    %419 = vmatprep.subr.mxu0 0.0
    %420 = vmatpush1.msra.mxu0 0.0
    %421 = vmatprep.subr.mxu0 0.0
    %422 = vmatpush1.msra.mxu0 0.0
    %423 = vmatprep.subr.mxu0 0.0
    %424 = vmatpush1.msra.mxu0 0.0
    %425 = vmatprep.subr.mxu0 0.0
    %426 = vmatpush1.msra.mxu0 0.0
    %427 = vmatprep.subr.mxu0 0.0
    %428 = vmatpush1.msra.mxu0 0.0
    %429 = vmatprep.subr.mxu0 0.0
    %430 = vmatpush1.msra.mxu0 0.0
    %431 = vmatprep.subr.mxu0 0.0
    %432 = vmatpush1.msra.mxu0 0.0
    %433 = vmatprep.subr.mxu0 0.0
    %434 = vmatpush1.msra.mxu0 0.0
    %435 = vmatprep.subr.mxu0 0.0
    %436 = vmatpush1.msra.mxu0 0.0
    %437 = vmatprep.subr.mxu0 0.0
    %438 = vmatpush1.msra.mxu0 0.0
    %439 = vmatprep.subr.mxu0 0.0
    %440 = vmatpush1.msra.mxu0 0.0
    %441 = vmatprep.subr.mxu0 0.0
    %442 = vmatpush1.msra.mxu0 0.0
    %443 = vmatprep.subr.mxu0 0.0
    %444 = vmatpush1.msra.mxu0 0.0
    %445 = vmatprep.subr.mxu0 0.0
    %446 = vmatpush1.msra.mxu0 0.0
    %447 = vmatprep.subr.mxu0 0.0
    %448 = vmatpush1.msra.mxu0 0.0
    %449 = vmatprep.subr.mxu0 0.0
    %450 = vmatpush1.msra.mxu0 0.0
    %451 = vmatprep.subr.mxu0 0.0
    %452 = vmatpush1.msra.mxu0 0.0
    %453 = vmatprep.subr.mxu0 0.0
    %454 = vmatpush1.msra.mxu0 0.0
    %455 = vmatprep.subr.mxu0 0.0
    %456 = vmatpush1.msra.mxu0 0.0
    %457 = vmatprep.subr.mxu0 0.0
    %458 = vmatpush1.msra.mxu0 0.0
    %459 = vmatprep.subr.mxu0 0.0
    %460 = vmatpush1.msra.mxu0 0.0
    %461 = vmatprep.subr.mxu0 0.0
    %462 = vmatpush1.msra.mxu0 0.0
    %463 = vmatprep.subr.mxu0 0.0
    %464 = vmatpush1.msra.mxu0 0.0
    %465 = vmatprep.mubr.f32.mxu0 0.0
    %v466 = vand.u32 %v85, 4294901760
    %v467 = vsub.f32 %v85, %v466
    %v468 = vand.u32 %v467, 4294901760
    %469 = vmatmul.mubr.f32.gmra.mrb[0].mxu0 %v468
    %v470 = vpop.f32.mrb[0].mxu0
    %v471 = vadd.f32 %v375, %v470
    %v472 = vpop.f32.mrb[0].mxu0
    %473 = vmatprep.mubr.f32.mxu0 0.0
    %v474 = vand.u32 %v88, 4294901760
    %v475 = vsub.f32 %v88, %v474
    %v476 = vand.u32 %v475, 4294901760
    %477 = vmatmul.mubr.f32.gmra.mrb[0].mxu0 %v476
    %v478 = vpop.f32.mrb[0].mxu0
    %v479 = vadd.f32 %v382, %v478
    %v480 = vpop.f32.mrb[0].mxu0
    %481 = vmatprep.mubr.f32.mxu0 0.0
    %v482 = vand.u32 %v91, 4294901760
    %v483 = vsub.f32 %v91, %v482
    %v484 = vand.u32 %v483, 4294901760
    %485 = vmatmul.mubr.f32.gmra.mrb[0].mxu0 %v484
    %v486 = vpop.f32.mrb[0].mxu0
    %v487 = vadd.f32 %v389, %v486
    %v488 = vpop.f32.mrb[0].mxu0
    %489 = vmatprep.mubr.f32.mxu0 0.0
    %v490 = vand.u32 %v94, 4294901760
    %v491 = vsub.f32 %v94, %v490
    %v492 = vand.u32 %v491, 4294901760
    %493 = vmatmul.mubr.f32.gmra.mrb[0].mxu0 %v492
    %v494 = vpop.f32.mrb[0].mxu0
    %v495 = vadd.f32 %v396, %v494
    %v496 = vpop.f32.mrb[0].mxu0
    %497 = vdwg.mxu0
    %498 = vmatprep.subr.mxu0 0.0
    %v499 = vand.u32 %v77, 4294901760
    %v500 = vsub.f32 %v77, %v499
    %v501 = vand.u32 %v500, 4294901760
    %502 = vmatpush1.msra.mxu0 %v501
    %503 = vmatprep.subr.mxu0 0.0
    %v504 = vand.u32 %v78, 4294901760
    %v505 = vsub.f32 %v78, %v504
    %v506 = vand.u32 %v505, 4294901760
    %507 = vmatpush1.msra.mxu0 %v506
    %508 = vmatprep.subr.mxu0 0.0
    %509 = vmatpush1.msra.mxu0 0.0
    %510 = vmatprep.subr.mxu0 0.0
    %511 = vmatpush1.msra.mxu0 0.0
    %512 = vmatprep.subr.mxu0 0.0
    %513 = vmatpush1.msra.mxu0 0.0
    %514 = vmatprep.subr.mxu0 0.0
    %515 = vmatpush1.msra.mxu0 0.0
    %516 = vmatprep.subr.mxu0 0.0
    %517 = vmatpush1.msra.mxu0 0.0
    %518 = vmatprep.subr.mxu0 0.0
    %519 = vmatpush1.msra.mxu0 0.0
    %520 = vmatprep.subr.mxu0 0.0
    %521 = vmatpush1.msra.mxu0 0.0
    %522 = vmatprep.subr.mxu0 0.0
    %523 = vmatpush1.msra.mxu0 0.0
    %524 = vmatprep.subr.mxu0 0.0
    %525 = vmatpush1.msra.mxu0 0.0
    %526 = vmatprep.subr.mxu0 0.0
    %527 = vmatpush1.msra.mxu0 0.0
    %528 = vmatprep.subr.mxu0 0.0
    %529 = vmatpush1.msra.mxu0 0.0
    %530 = vmatprep.subr.mxu0 0.0
    %531 = vmatpush1.msra.mxu0 0.0
    %532 = vmatprep.subr.mxu0 0.0
    %533 = vmatpush1.msra.mxu0 0.0
    %534 = vmatprep.subr.mxu0 0.0
    %535 = vmatpush1.msra.mxu0 0.0
    %536 = vmatprep.subr.mxu0 0.0
    %537 = vmatpush1.msra.mxu0 0.0
    %538 = vmatprep.subr.mxu0 0.0
    %539 = vmatpush1.msra.mxu0 0.0
    %540 = vmatprep.subr.mxu0 0.0
    %541 = vmatpush1.msra.mxu0 0.0
    %542 = vmatprep.subr.mxu0 0.0
    %543 = vmatpush1.msra.mxu0 0.0
    %544 = vmatprep.subr.mxu0 0.0
    %545 = vmatpush1.msra.mxu0 0.0
    %546 = vmatprep.subr.mxu0 0.0
    %547 = vmatpush1.msra.mxu0 0.0
    %548 = vmatprep.subr.mxu0 0.0
    %549 = vmatpush1.msra.mxu0 0.0
    %550 = vmatprep.subr.mxu0 0.0
    %551 = vmatpush1.msra.mxu0 0.0
    %552 = vmatprep.subr.mxu0 0.0
    %553 = vmatpush1.msra.mxu0 0.0
    %554 = vmatprep.subr.mxu0 0.0
    %555 = vmatpush1.msra.mxu0 0.0
    %556 = vmatprep.subr.mxu0 0.0
    %557 = vmatpush1.msra.mxu0 0.0
    %558 = vmatprep.subr.mxu0 0.0
    %559 = vmatpush1.msra.mxu0 0.0
    %560 = vmatprep.subr.mxu0 0.0
    %561 = vmatpush1.msra.mxu0 0.0
    %562 = vmatprep.subr.mxu0 0.0
    %563 = vmatpush1.msra.mxu0 0.0
    %564 = vmatprep.subr.mxu0 0.0
    %565 = vmatpush1.msra.mxu0 0.0
    %566 = vmatprep.subr.mxu0 0.0
    %567 = vmatpush1.msra.mxu0 0.0
    %568 = vmatprep.mubr.f32.mxu0 0.0
    %v569 = vand.u32 %v85, 4294901760
    %570 = vmatmul.mubr.f32.gmra.mrb[0].mxu0 %v569
    %v571 = vpop.f32.mrb[0].mxu0
    %v572 = vadd.f32 %v471, %v571
    %v573 = vpop.f32.mrb[0].mxu0
    %574 = vmatprep.mubr.f32.mxu0 0.0
    %v575 = vand.u32 %v88, 4294901760
    %576 = vmatmul.mubr.f32.gmra.mrb[0].mxu0 %v575
    %v577 = vpop.f32.mrb[0].mxu0
    %v578 = vadd.f32 %v479, %v577
    %v579 = vpop.f32.mrb[0].mxu0
    %580 = vmatprep.mubr.f32.mxu0 0.0
    %v581 = vand.u32 %v91, 4294901760
    %582 = vmatmul.mubr.f32.gmra.mrb[0].mxu0 %v581
    %v583 = vpop.f32.mrb[0].mxu0
    %v584 = vadd.f32 %v487, %v583
    %v585 = vpop.f32.mrb[0].mxu0
    %586 = vmatprep.mubr.f32.mxu0 0.0
    %v587 = vand.u32 %v94, 4294901760
    %588 = vmatmul.mubr.f32.gmra.mrb[0].mxu0 %v587
    %v589 = vpop.f32.mrb[0].mxu0
    %v590 = vadd.f32 %v495, %v589
    %v591 = vpop.f32.mrb[0].mxu0
    %592 = vdwg.mxu0
    %593 = vmatprep.subr.mxu0 0.0
    %v594 = vand.u32 %v77, 4294901760
    %595 = vmatpush1.msra.mxu0 %v594
    %596 = vmatprep.subr.mxu0 0.0
    %v597 = vand.u32 %v78, 4294901760
    %598 = vmatpush1.msra.mxu0 %v597
    %599 = vmatprep.subr.mxu0 0.0
    %600 = vmatpush1.msra.mxu0 0.0
    %601 = vmatprep.subr.mxu0 0.0
    %602 = vmatpush1.msra.mxu0 0.0
    %603 = vmatprep.subr.mxu0 0.0
    %604 = vmatpush1.msra.mxu0 0.0
    %605 = vmatprep.subr.mxu0 0.0
    %606 = vmatpush1.msra.mxu0 0.0
    %607 = vmatprep.subr.mxu0 0.0
    %608 = vmatpush1.msra.mxu0 0.0
    %609 = vmatprep.subr.mxu0 0.0
    %610 = vmatpush1.msra.mxu0 0.0
    %611 = vmatprep.subr.mxu0 0.0
    %612 = vmatpush1.msra.mxu0 0.0
    %613 = vmatprep.subr.mxu0 0.0
    %614 = vmatpush1.msra.mxu0 0.0
    %615 = vmatprep.subr.mxu0 0.0
    %616 = vmatpush1.msra.mxu0 0.0
    %617 = vmatprep.subr.mxu0 0.0
    %618 = vmatpush1.msra.mxu0 0.0
    %619 = vmatprep.subr.mxu0 0.0
    %620 = vmatpush1.msra.mxu0 0.0
    %621 = vmatprep.subr.mxu0 0.0
    %622 = vmatpush1.msra.mxu0 0.0
    %623 = vmatprep.subr.mxu0 0.0
    %624 = vmatpush1.msra.mxu0 0.0
    %625 = vmatprep.subr.mxu0 0.0
    %626 = vmatpush1.msra.mxu0 0.0
    %627 = vmatprep.subr.mxu0 0.0
    %628 = vmatpush1.msra.mxu0 0.0
    %629 = vmatprep.subr.mxu0 0.0
    %630 = vmatpush1.msra.mxu0 0.0
    %631 = vmatprep.subr.mxu0 0.0
    %632 = vmatpush1.msra.mxu0 0.0
    %633 = vmatprep.subr.mxu0 0.0
    %634 = vmatpush1.msra.mxu0 0.0
    %635 = vmatprep.subr.mxu0 0.0
    %636 = vmatpush1.msra.mxu0 0.0
    %637 = vmatprep.subr.mxu0 0.0
    %638 = vmatpush1.msra.mxu0 0.0
    %639 = vmatprep.subr.mxu0 0.0
    %640 = vmatpush1.msra.mxu0 0.0
    %641 = vmatprep.subr.mxu0 0.0
    %642 = vmatpush1.msra.mxu0 0.0
    %643 = vmatprep.subr.mxu0 0.0
    %644 = vmatpush1.msra.mxu0 0.0
    %645 = vmatprep.subr.mxu0 0.0
    %646 = vmatpush1.msra.mxu0 0.0
    %647 = vmatprep.subr.mxu0 0.0
    %648 = vmatpush1.msra.mxu0 0.0
    %649 = vmatprep.subr.mxu0 0.0
    %650 = vmatpush1.msra.mxu0 0.0
    %651 = vmatprep.subr.mxu0 0.0
    %652 = vmatpush1.msra.mxu0 0.0
    %653 = vmatprep.subr.mxu0 0.0
    %654 = vmatpush1.msra.mxu0 0.0
    %655 = vmatprep.subr.mxu0 0.0
    %656 = vmatpush1.msra.mxu0 0.0
    %657 = vmatprep.subr.mxu0 0.0
    %658 = vmatpush1.msra.mxu0 0.0
    %659 = vmatprep.mubr.f32.mxu0 0.0
    %v660 = vand.u32 %v85, 4294901760
    %661 = vmatmul.mubr.f32.gmra.mrb[0].mxu0 %v660
    %v662 = vpop.f32.mrb[0].mxu0
    %v663 = vadd.f32 %v572, %v662
    %v664 = vpop.f32.mrb[0].mxu0
    %665 = vmatprep.mubr.f32.mxu0 0.0
    %v666 = vand.u32 %v88, 4294901760
    %667 = vmatmul.mubr.f32.gmra.mrb[0].mxu0 %v666
    %v668 = vpop.f32.mrb[0].mxu0
    %v669 = vadd.f32 %v578, %v668
    %v670 = vpop.f32.mrb[0].mxu0
    %671 = vmatprep.mubr.f32.mxu0 0.0
    %v672 = vand.u32 %v91, 4294901760
    %673 = vmatmul.mubr.f32.gmra.mrb[0].mxu0 %v672
    %v674 = vpop.f32.mrb[0].mxu0
    %v675 = vadd.f32 %v584, %v674
    %v676 = vpop.f32.mrb[0].mxu0
    %677 = vmatprep.mubr.f32.mxu0 0.0
    %v678 = vand.u32 %v94, 4294901760
    %679 = vmatmul.mubr.f32.gmra.mrb[0].mxu0 %v678
    %v680 = vpop.f32.mrb[0].mxu0
    %v681 = vadd.f32 %v590, %v680
    %v682 = vpop.f32.mrb[0].mxu0
    %683 = vdwg.mxu0
    %v684 = vld [vmem:[%s3] sm:$0xff]
    %v685 = vld [vmem:[%s3 + $0x8] sm:$0xff]
    %v686 = vld [vmem:[%s3 + $0x10] sm:$0xff]
    %v687 = vld [vmem:[%s3 + $0x18] sm:$0xff]
    %689 = vset.pattern.permute.xlu0 0
    %690 = vperm.xlu0 %689, %v684
    %v691 = vpop.permute.xlu0 %690
    %694 = vset.pattern.permute.xlu0 0
    %695 = vperm.xlu0 %694, %v685
    %v696 = vpop.permute.xlu0 %695
    %699 = vset.pattern.permute.xlu0 0
    %700 = vperm.xlu0 %699, %v686
    %v701 = vpop.permute.xlu0 %700
    %704 = vset.pattern.permute.xlu0 0
    %705 = vperm.xlu0 %704, %v687
    %v706 = vpop.permute.xlu0 %705
    %v708 = vadd.f32 %v663, %v691
    %v709 = vadd.f32 %v669, %v696
    %v710 = vadd.f32 %v675, %v701
    %v711 = vadd.f32 %v681, %v706
    %712 = vset.pattern.permute.xlu0 1
    %713 = vperm.xlu0 %712, %v684
    %v714 = vpop.permute.xlu0 %713
    %716 = vset.pattern.permute.xlu0 1
    %717 = vperm.xlu0 %716, %v685
    %v718 = vpop.permute.xlu0 %717
    %720 = vset.pattern.permute.xlu0 1
    %721 = vperm.xlu0 %720, %v686
    %v722 = vpop.permute.xlu0 %721
    %724 = vset.pattern.permute.xlu0 1
    %725 = vperm.xlu0 %724, %v687
    %v726 = vpop.permute.xlu0 %725
    %v728 = vadd.f32 %v663, %v714
    %v729 = vadd.f32 %v669, %v718
    %v730 = vadd.f32 %v675, %v722
    %v731 = vadd.f32 %v681, %v726
    %732 = vset.pattern.permute.xlu0 2
    %733 = vperm.xlu0 %732, %v684
    %v734 = vpop.permute.xlu0 %733
    %736 = vset.pattern.permute.xlu0 2
    %737 = vperm.xlu0 %736, %v685
    %v738 = vpop.permute.xlu0 %737
    %740 = vset.pattern.permute.xlu0 2
    %741 = vperm.xlu0 %740, %v686
    %v742 = vpop.permute.xlu0 %741
    %744 = vset.pattern.permute.xlu0 2
    %745 = vperm.xlu0 %744, %v687
    %v746 = vpop.permute.xlu0 %745
    %v748 = vadd.f32 %v663, %v734
    %v749 = vadd.f32 %v669, %v738
    %v750 = vadd.f32 %v675, %v742
    %v751 = vadd.f32 %v681, %v746
    %752 = vset.pattern.permute.xlu0 3
    %753 = vperm.xlu0 %752, %v684
    %v754 = vpop.permute.xlu0 %753
    %756 = vset.pattern.permute.xlu0 3
    %757 = vperm.xlu0 %756, %v685
    %v758 = vpop.permute.xlu0 %757
    %760 = vset.pattern.permute.xlu0 3
    %761 = vperm.xlu0 %760, %v686
    %v762 = vpop.permute.xlu0 %761
    %764 = vset.pattern.permute.xlu0 3
    %765 = vperm.xlu0 %764, %v687
    %v766 = vpop.permute.xlu0 %765
    %v768 = vadd.f32 %v663, %v754
    %v769 = vadd.f32 %v669, %v758
    %v770 = vadd.f32 %v675, %v762
    %v771 = vadd.f32 %v681, %v766
    %v772 = vld [vmem:[%s4] sm:$0x1]
    %v773 = vld [vmem:[#allocation2] sm:$0x1]
    %775 = vset.pattern.permute.xlu0 0
    %776 = vperm.xlu0 %775, %v773
    %v777 = vpop.permute.xlu0 %776
    %v779 = vlaneseq
    %v780 = vshrl.u32 %v779, 7
    %v781 = vsub.s32 0, %v780
    %v782 = vrot.slane %v777, %v781
    %783 = vmatprep.subr.mxu0 0.0
    %v784 = vand.u32 %v708, 4294901760
    %785 = vmatpush1.msra.mxu0 %v784
    %786 = vmatprep.subr.mxu0 0.0
    %v787 = vand.u32 %v709, 4294901760
    %788 = vmatpush1.msra.mxu0 %v787
    %789 = vmatprep.subr.mxu0 0.0
    %v790 = vand.u32 %v710, 4294901760
    %791 = vmatpush1.msra.mxu0 %v790
    %792 = vmatprep.subr.mxu0 0.0
    %v793 = vand.u32 %v711, 4294901760
    %794 = vmatpush1.msra.mxu0 %v793
    %795 = vmatprep.subr.mxu0 0.0
    %v796 = vand.u32 %v728, 4294901760
    %797 = vmatpush1.msra.mxu0 %v796
    %798 = vmatprep.subr.mxu0 0.0
    %v799 = vand.u32 %v729, 4294901760
    %800 = vmatpush1.msra.mxu0 %v799
    %801 = vmatprep.subr.mxu0 0.0
    %v802 = vand.u32 %v730, 4294901760
    %803 = vmatpush1.msra.mxu0 %v802
    %804 = vmatprep.subr.mxu0 0.0
    %v805 = vand.u32 %v731, 4294901760
    %806 = vmatpush1.msra.mxu0 %v805
    %807 = vmatprep.subr.mxu0 0.0
    %v808 = vand.u32 %v748, 4294901760
    %809 = vmatpush1.msra.mxu0 %v808
    %810 = vmatprep.subr.mxu0 0.0
    %v811 = vand.u32 %v749, 4294901760
    %812 = vmatpush1.msra.mxu0 %v811
    %813 = vmatprep.subr.mxu0 0.0
    %v814 = vand.u32 %v750, 4294901760
    %815 = vmatpush1.msra.mxu0 %v814
    %816 = vmatprep.subr.mxu0 0.0
    %v817 = vand.u32 %v751, 4294901760
    %818 = vmatpush1.msra.mxu0 %v817
    %819 = vmatprep.subr.mxu0 0.0
    %v820 = vand.u32 %v768, 4294901760
    %821 = vmatpush1.msra.mxu0 %v820
    %822 = vmatprep.subr.mxu0 0.0
    %v823 = vand.u32 %v769, 4294901760
    %824 = vmatpush1.msra.mxu0 %v823
    %825 = vmatprep.subr.mxu0 0.0
    %v826 = vand.u32 %v770, 4294901760
    %827 = vmatpush1.msra.mxu0 %v826
    %828 = vmatprep.subr.mxu0 0.0
    %v829 = vand.u32 %v771, 4294901760
    %830 = vmatpush1.msra.mxu0 %v829
    %831 = vmatprep.subr.mxu0 0.0
    %832 = vmatpush1.msra.mxu0 0.0
    %833 = vmatprep.subr.mxu0 0.0
    %834 = vmatpush1.msra.mxu0 0.0
    %835 = vmatprep.subr.mxu0 0.0
    %836 = vmatpush1.msra.mxu0 0.0
    %837 = vmatprep.subr.mxu0 0.0
    %838 = vmatpush1.msra.mxu0 0.0
    %839 = vmatprep.subr.mxu0 0.0
    %840 = vmatpush1.msra.mxu0 0.0
    %841 = vmatprep.subr.mxu0 0.0
    %842 = vmatpush1.msra.mxu0 0.0
    %843 = vmatprep.subr.mxu0 0.0
    %844 = vmatpush1.msra.mxu0 0.0
    %845 = vmatprep.subr.mxu0 0.0
    %846 = vmatpush1.msra.mxu0 0.0
    %847 = vmatprep.subr.mxu0 0.0
    %848 = vmatpush1.msra.mxu0 0.0
    %849 = vmatprep.subr.mxu0 0.0
    %850 = vmatpush1.msra.mxu0 0.0
    %851 = vmatprep.subr.mxu0 0.0
    %852 = vmatpush1.msra.mxu0 0.0
    %853 = vmatprep.subr.mxu0 0.0
    %854 = vmatpush1.msra.mxu0 0.0
    %855 = vmatprep.subr.mxu0 0.0
    %856 = vmatpush1.msra.mxu0 0.0
    %857 = vmatprep.subr.mxu0 0.0
    %858 = vmatpush1.msra.mxu0 0.0
    %859 = vmatprep.subr.mxu0 0.0
    %860 = vmatpush1.msra.mxu0 0.0
    %861 = vmatprep.subr.mxu0 0.0
    %862 = vmatpush1.msra.mxu0 0.0
    %863 = vmatprep.mubr.f32.mxu0 0.0
    %v864 = vand.u32 %v772, 4294901760
    %v865 = vsub.f32 %v772, %v864
    %v866 = vand.u32 %v865, 4294901760
    %v867 = vsub.f32 %v865, %v866
    %v868 = vand.u32 %v867, 4294901760
    %869 = vmatmul.mubr.f32.gmra.mrb[0].mxu0 %v868
    %v870 = vpop.f32.mrb[0].mxu0
    %v871 = vadd.f32 %v782, %v870
    %v872 = vpop.f32.mrb[0].mxu0
    %873 = vdwg.mxu0
    %874 = vmatprep.subr.mxu0 0.0
    %v875 = vand.u32 %v708, 4294901760
    %v876 = vsub.f32 %v708, %v875
    %v877 = vand.u32 %v876, 4294901760
    %v878 = vsub.f32 %v876, %v877
    %v879 = vand.u32 %v878, 4294901760
    %880 = vmatpush1.msra.mxu0 %v879
    %881 = vmatprep.subr.mxu0 0.0
    %v882 = vand.u32 %v709, 4294901760
    %v883 = vsub.f32 %v709, %v882
    %v884 = vand.u32 %v883, 4294901760
    %v885 = vsub.f32 %v883, %v884
    %v886 = vand.u32 %v885, 4294901760
    %887 = vmatpush1.msra.mxu0 %v886
    %888 = vmatprep.subr.mxu0 0.0
    %v889 = vand.u32 %v710, 4294901760
    %v890 = vsub.f32 %v710, %v889
    %v891 = vand.u32 %v890, 4294901760
    %v892 = vsub.f32 %v890, %v891
    %v893 = vand.u32 %v892, 4294901760
    %894 = vmatpush1.msra.mxu0 %v893
    %895 = vmatprep.subr.mxu0 0.0
    %v896 = vand.u32 %v711, 4294901760
    %v897 = vsub.f32 %v711, %v896
    %v898 = vand.u32 %v897, 4294901760
    %v899 = vsub.f32 %v897, %v898
    %v900 = vand.u32 %v899, 4294901760
    %901 = vmatpush1.msra.mxu0 %v900
    %902 = vmatprep.subr.mxu0 0.0
    %v903 = vand.u32 %v728, 4294901760
    %v904 = vsub.f32 %v728, %v903
    %v905 = vand.u32 %v904, 4294901760
    %v906 = vsub.f32 %v904, %v905
    %v907 = vand.u32 %v906, 4294901760
    %908 = vmatpush1.msra.mxu0 %v907
    %909 = vmatprep.subr.mxu0 0.0
    %v910 = vand.u32 %v729, 4294901760
    %v911 = vsub.f32 %v729, %v910
    %v912 = vand.u32 %v911, 4294901760
    %v913 = vsub.f32 %v911, %v912
    %v914 = vand.u32 %v913, 4294901760
    %915 = vmatpush1.msra.mxu0 %v914
    %916 = vmatprep.subr.mxu0 0.0
    %v917 = vand.u32 %v730, 4294901760
    %v918 = vsub.f32 %v730, %v917
    %v919 = vand.u32 %v918, 4294901760
    %v920 = vsub.f32 %v918, %v919
    %v921 = vand.u32 %v920, 4294901760
    %922 = vmatpush1.msra.mxu0 %v921
    %923 = vmatprep.subr.mxu0 0.0
    %v924 = vand.u32 %v731, 4294901760
    %v925 = vsub.f32 %v731, %v924
    %v926 = vand.u32 %v925, 4294901760
    %v927 = vsub.f32 %v925, %v926
    %v928 = vand.u32 %v927, 4294901760
    %929 = vmatpush1.msra.mxu0 %v928
    %930 = vmatprep.subr.mxu0 0.0
    %v931 = vand.u32 %v748, 4294901760
    %v932 = vsub.f32 %v748, %v931
    %v933 = vand.u32 %v932, 4294901760
    %v934 = vsub.f32 %v932, %v933
    %v935 = vand.u32 %v934, 4294901760
    %936 = vmatpush1.msra.mxu0 %v935
    %937 = vmatprep.subr.mxu0 0.0
    %v938 = vand.u32 %v749, 4294901760
    %v939 = vsub.f32 %v749, %v938
    %v940 = vand.u32 %v939, 4294901760
    %v941 = vsub.f32 %v939, %v940
    %v942 = vand.u32 %v941, 4294901760
    %943 = vmatpush1.msra.mxu0 %v942
    %944 = vmatprep.subr.mxu0 0.0
    %v945 = vand.u32 %v750, 4294901760
    %v946 = vsub.f32 %v750, %v945
    %v947 = vand.u32 %v946, 4294901760
    %v948 = vsub.f32 %v946, %v947
    %v949 = vand.u32 %v948, 4294901760
    %950 = vmatpush1.msra.mxu0 %v949
    %951 = vmatprep.subr.mxu0 0.0
    %v952 = vand.u32 %v751, 4294901760
    %v953 = vsub.f32 %v751, %v952
    %v954 = vand.u32 %v953, 4294901760
    %v955 = vsub.f32 %v953, %v954
    %v956 = vand.u32 %v955, 4294901760
    %957 = vmatpush1.msra.mxu0 %v956
    %958 = vmatprep.subr.mxu0 0.0
    %v959 = vand.u32 %v768, 4294901760
    %v960 = vsub.f32 %v768, %v959
    %v961 = vand.u32 %v960, 4294901760
    %v962 = vsub.f32 %v960, %v961
    %v963 = vand.u32 %v962, 4294901760
    %964 = vmatpush1.msra.mxu0 %v963
    %965 = vmatprep.subr.mxu0 0.0
    %v966 = vand.u32 %v769, 4294901760
    %v967 = vsub.f32 %v769, %v966
    %v968 = vand.u32 %v967, 4294901760
    %v969 = vsub.f32 %v967, %v968
    %v970 = vand.u32 %v969, 4294901760
    %971 = vmatpush1.msra.mxu0 %v970
    %972 = vmatprep.subr.mxu0 0.0
    %v973 = vand.u32 %v770, 4294901760
    %v974 = vsub.f32 %v770, %v973
    %v975 = vand.u32 %v974, 4294901760
    %v976 = vsub.f32 %v974, %v975
    %v977 = vand.u32 %v976, 4294901760
    %978 = vmatpush1.msra.mxu0 %v977
    %979 = vmatprep.subr.mxu0 0.0
    %v980 = vand.u32 %v771, 4294901760
    %v981 = vsub.f32 %v771, %v980
    %v982 = vand.u32 %v981, 4294901760
    %v983 = vsub.f32 %v981, %v982
    %v984 = vand.u32 %v983, 4294901760
    %985 = vmatpush1.msra.mxu0 %v984
    %986 = vmatprep.subr.mxu0 0.0
    %987 = vmatpush1.msra.mxu0 0.0
    %988 = vmatprep.subr.mxu0 0.0
    %989 = vmatpush1.msra.mxu0 0.0
    %990 = vmatprep.subr.mxu0 0.0
    %991 = vmatpush1.msra.mxu0 0.0
    %992 = vmatprep.subr.mxu0 0.0
    %993 = vmatpush1.msra.mxu0 0.0
    %994 = vmatprep.subr.mxu0 0.0
    %995 = vmatpush1.msra.mxu0 0.0
    %996 = vmatprep.subr.mxu0 0.0
    %997 = vmatpush1.msra.mxu0 0.0
    %998 = vmatprep.subr.mxu0 0.0
    %999 = vmatpush1.msra.mxu0 0.0
    %1000 = vmatprep.subr.mxu0 0.0
    %1001 = vmatpush1.msra.mxu0 0.0
    %1002 = vmatprep.subr.mxu0 0.0
    %1003 = vmatpush1.msra.mxu0 0.0
    %1004 = vmatprep.subr.mxu0 0.0
    %1005 = vmatpush1.msra.mxu0 0.0
    %1006 = vmatprep.subr.mxu0 0.0
    %1007 = vmatpush1.msra.mxu0 0.0
    %1008 = vmatprep.subr.mxu0 0.0
    %1009 = vmatpush1.msra.mxu0 0.0
    %1010 = vmatprep.subr.mxu0 0.0
    %1011 = vmatpush1.msra.mxu0 0.0
    %1012 = vmatprep.subr.mxu0 0.0
    %1013 = vmatpush1.msra.mxu0 0.0
    %1014 = vmatprep.subr.mxu0 0.0
    %1015 = vmatpush1.msra.mxu0 0.0
    %1016 = vmatprep.subr.mxu0 0.0
    %1017 = vmatpush1.msra.mxu0 0.0
    %1018 = vmatprep.mubr.f32.mxu0 0.0
    %v1019 = vand.u32 %v772, 4294901760
    %1020 = vmatmul.mubr.f32.gmra.mrb[0].mxu0 %v1019
    %v1021 = vpop.f32.mrb[0].mxu0
    %v1022 = vadd.f32 %v871, %v1021
    %v1023 = vpop.f32.mrb[0].mxu0
    %1024 = vdwg.mxu0
    %1025 = vmatprep.subr.mxu0 0.0
    %v1026 = vand.u32 %v708, 4294901760
    %v1027 = vsub.f32 %v708, %v1026
    %1028 = vmatpush1.msra.mxu0 %v1027
    %1029 = vmatprep.subr.mxu0 0.0
    %v1030 = vand.u32 %v709, 4294901760
    %v1031 = vsub.f32 %v709, %v1030
    %1032 = vmatpush1.msra.mxu0 %v1031
    %1033 = vmatprep.subr.mxu0 0.0
    %v1034 = vand.u32 %v710, 4294901760
    %v1035 = vsub.f32 %v710, %v1034
    %1036 = vmatpush1.msra.mxu0 %v1035
    %1037 = vmatprep.subr.mxu0 0.0
    %v1038 = vand.u32 %v711, 4294901760
    %v1039 = vsub.f32 %v711, %v1038
    %1040 = vmatpush1.msra.mxu0 %v1039
    %1041 = vmatprep.subr.mxu0 0.0
    %v1042 = vand.u32 %v728, 4294901760
    %v1043 = vsub.f32 %v728, %v1042
    %1044 = vmatpush1.msra.mxu0 %v1043
    %1045 = vmatprep.subr.mxu0 0.0
    %v1046 = vand.u32 %v729, 4294901760
    %v1047 = vsub.f32 %v729, %v1046
    %1048 = vmatpush1.msra.mxu0 %v1047
    %1049 = vmatprep.subr.mxu0 0.0
    %v1050 = vand.u32 %v730, 4294901760
    %v1051 = vsub.f32 %v730, %v1050
    %1052 = vmatpush1.msra.mxu0 %v1051
    %1053 = vmatprep.subr.mxu0 0.0
    %v1054 = vand.u32 %v731, 4294901760
    %v1055 = vsub.f32 %v731, %v1054
    %1056 = vmatpush1.msra.mxu0 %v1055
    %1057 = vmatprep.subr.mxu0 0.0
    %v1058 = vand.u32 %v748, 4294901760
    %v1059 = vsub.f32 %v748, %v1058
    %1060 = vmatpush1.msra.mxu0 %v1059
    %1061 = vmatprep.subr.mxu0 0.0
    %v1062 = vand.u32 %v749, 4294901760
    %v1063 = vsub.f32 %v749, %v1062
    %1064 = vmatpush1.msra.mxu0 %v1063
    %1065 = vmatprep.subr.mxu0 0.0
    %v1066 = vand.u32 %v750, 4294901760
    %v1067 = vsub.f32 %v750, %v1066
    %1068 = vmatpush1.msra.mxu0 %v1067
    %1069 = vmatprep.subr.mxu0 0.0
    %v1070 = vand.u32 %v751, 4294901760
    %v1071 = vsub.f32 %v751, %v1070
    %1072 = vmatpush1.msra.mxu0 %v1071
    %1073 = vmatprep.subr.mxu0 0.0
    %v1074 = vand.u32 %v768, 4294901760
    %v1075 = vsub.f32 %v768, %v1074
    %1076 = vmatpush1.msra.mxu0 %v1075
    %1077 = vmatprep.subr.mxu0 0.0
    %v1078 = vand.u32 %v769, 4294901760
    %v1079 = vsub.f32 %v769, %v1078
    %1080 = vmatpush1.msra.mxu0 %v1079
    %1081 = vmatprep.subr.mxu0 0.0
    %v1082 = vand.u32 %v770, 4294901760
    %v1083 = vsub.f32 %v770, %v1082
    %1084 = vmatpush1.msra.mxu0 %v1083
    %1085 = vmatprep.subr.mxu0 0.0
    %v1086 = vand.u32 %v771, 4294901760
    %v1087 = vsub.f32 %v771, %v1086
    %1088 = vmatpush1.msra.mxu0 %v1087
    %1089 = vmatprep.subr.mxu0 0.0
    %1090 = vmatpush1.msra.mxu0 0.0
    %1091 = vmatprep.subr.mxu0 0.0
    %1092 = vmatpush1.msra.mxu0 0.0
    %1093 = vmatprep.subr.mxu0 0.0
    %1094 = vmatpush1.msra.mxu0 0.0
    %1095 = vmatprep.subr.mxu0 0.0
    %1096 = vmatpush1.msra.mxu0 0.0
    %1097 = vmatprep.subr.mxu0 0.0
    %1098 = vmatpush1.msra.mxu0 0.0
    %1099 = vmatprep.subr.mxu0 0.0
    %1100 = vmatpush1.msra.mxu0 0.0
    %1101 = vmatprep.subr.mxu0 0.0
    %1102 = vmatpush1.msra.mxu0 0.0
    %1103 = vmatprep.subr.mxu0 0.0
    %1104 = vmatpush1.msra.mxu0 0.0
    %1105 = vmatprep.subr.mxu0 0.0
    %1106 = vmatpush1.msra.mxu0 0.0
    %1107 = vmatprep.subr.mxu0 0.0
    %1108 = vmatpush1.msra.mxu0 0.0
    %1109 = vmatprep.subr.mxu0 0.0
    %1110 = vmatpush1.msra.mxu0 0.0
    %1111 = vmatprep.subr.mxu0 0.0
    %1112 = vmatpush1.msra.mxu0 0.0
    %1113 = vmatprep.subr.mxu0 0.0
    %1114 = vmatpush1.msra.mxu0 0.0
    %1115 = vmatprep.subr.mxu0 0.0
    %1116 = vmatpush1.msra.mxu0 0.0
    %1117 = vmatprep.subr.mxu0 0.0
    %1118 = vmatpush1.msra.mxu0 0.0
    %1119 = vmatprep.subr.mxu0 0.0
    %1120 = vmatpush1.msra.mxu0 0.0
    %1121 = vmatprep.mubr.f32.mxu0 0.0
    %v1122 = vand.u32 %v772, 4294901760
    %v1123 = vsub.f32 %v772, %v1122
    %1124 = vmatmul.mubr.f32.gmra.mrb[0].mxu0 %v1123
    %v1125 = vpop.f32.mrb[0].mxu0
    %v1126 = vadd.f32 %v1022, %v1125
    %v1127 = vpop.f32.mrb[0].mxu0
    %1128 = vdwg.mxu0
    %1129 = vmatprep.subr.mxu0 0.0
    %v1130 = vand.u32 %v708, 4294901760
    %1131 = vmatpush1.msra.mxu0 %v1130
    %1132 = vmatprep.subr.mxu0 0.0
    %v1133 = vand.u32 %v709, 4294901760
    %1134 = vmatpush1.msra.mxu0 %v1133
    %1135 = vmatprep.subr.mxu0 0.0
    %v1136 = vand.u32 %v710, 4294901760
    %1137 = vmatpush1.msra.mxu0 %v1136
    %1138 = vmatprep.subr.mxu0 0.0
    %v1139 = vand.u32 %v711, 4294901760
    %1140 = vmatpush1.msra.mxu0 %v1139
    %1141 = vmatprep.subr.mxu0 0.0
    %v1142 = vand.u32 %v728, 4294901760
    %1143 = vmatpush1.msra.mxu0 %v1142
    %1144 = vmatprep.subr.mxu0 0.0
    %v1145 = vand.u32 %v729, 4294901760
    %1146 = vmatpush1.msra.mxu0 %v1145
    %1147 = vmatprep.subr.mxu0 0.0
    %v1148 = vand.u32 %v730, 4294901760
    %1149 = vmatpush1.msra.mxu0 %v1148
    %1150 = vmatprep.subr.mxu0 0.0
    %v1151 = vand.u32 %v731, 4294901760
    %1152 = vmatpush1.msra.mxu0 %v1151
    %1153 = vmatprep.subr.mxu0 0.0
    %v1154 = vand.u32 %v748, 4294901760
    %1155 = vmatpush1.msra.mxu0 %v1154
    %1156 = vmatprep.subr.mxu0 0.0
    %v1157 = vand.u32 %v749, 4294901760
    %1158 = vmatpush1.msra.mxu0 %v1157
    %1159 = vmatprep.subr.mxu0 0.0
    %v1160 = vand.u32 %v750, 4294901760
    %1161 = vmatpush1.msra.mxu0 %v1160
    %1162 = vmatprep.subr.mxu0 0.0
    %v1163 = vand.u32 %v751, 4294901760
    %1164 = vmatpush1.msra.mxu0 %v1163
    %1165 = vmatprep.subr.mxu0 0.0
    %v1166 = vand.u32 %v768, 4294901760
    %1167 = vmatpush1.msra.mxu0 %v1166
    %1168 = vmatprep.subr.mxu0 0.0
    %v1169 = vand.u32 %v769, 4294901760
    %1170 = vmatpush1.msra.mxu0 %v1169
    %1171 = vmatprep.subr.mxu0 0.0
    %v1172 = vand.u32 %v770, 4294901760
    %1173 = vmatpush1.msra.mxu0 %v1172
    %1174 = vmatprep.subr.mxu0 0.0
    %v1175 = vand.u32 %v771, 4294901760
    %1176 = vmatpush1.msra.mxu0 %v1175
    %1177 = vmatprep.subr.mxu0 0.0
    %1178 = vmatpush1.msra.mxu0 0.0
    %1179 = vmatprep.subr.mxu0 0.0
    %1180 = vmatpush1.msra.mxu0 0.0
    %1181 = vmatprep.subr.mxu0 0.0
    %1182 = vmatpush1.msra.mxu0 0.0
    %1183 = vmatprep.subr.mxu0 0.0
    %1184 = vmatpush1.msra.mxu0 0.0
    %1185 = vmatprep.subr.mxu0 0.0
    %1186 = vmatpush1.msra.mxu0 0.0
    %1187 = vmatprep.subr.mxu0 0.0
    %1188 = vmatpush1.msra.mxu0 0.0
    %1189 = vmatprep.subr.mxu0 0.0
    %1190 = vmatpush1.msra.mxu0 0.0
    %1191 = vmatprep.subr.mxu0 0.0
    %1192 = vmatpush1.msra.mxu0 0.0
    %1193 = vmatprep.subr.mxu0 0.0
    %1194 = vmatpush1.msra.mxu0 0.0
    %1195 = vmatprep.subr.mxu0 0.0
    %1196 = vmatpush1.msra.mxu0 0.0
    %1197 = vmatprep.subr.mxu0 0.0
    %1198 = vmatpush1.msra.mxu0 0.0
    %1199 = vmatprep.subr.mxu0 0.0
    %1200 = vmatpush1.msra.mxu0 0.0
    %1201 = vmatprep.subr.mxu0 0.0
    %1202 = vmatpush1.msra.mxu0 0.0
    %1203 = vmatprep.subr.mxu0 0.0
    %1204 = vmatpush1.msra.mxu0 0.0
    %1205 = vmatprep.subr.mxu0 0.0
    %1206 = vmatpush1.msra.mxu0 0.0
    %1207 = vmatprep.subr.mxu0 0.0
    %1208 = vmatpush1.msra.mxu0 0.0
    %1209 = vmatprep.mubr.f32.mxu0 0.0
    %v1210 = vand.u32 %v772, 4294901760
    %v1211 = vsub.f32 %v772, %v1210
    %v1212 = vand.u32 %v1211, 4294901760
    %1213 = vmatmul.mubr.f32.gmra.mrb[0].mxu0 %v1212
    %v1214 = vpop.f32.mrb[0].mxu0
    %v1215 = vadd.f32 %v1126, %v1214
    %v1216 = vpop.f32.mrb[0].mxu0
    %1217 = vdwg.mxu0
    %1218 = vmatprep.subr.mxu0 0.0
    %v1219 = vand.u32 %v708, 4294901760
    %v1220 = vsub.f32 %v708, %v1219
    %v1221 = vand.u32 %v1220, 4294901760
    %1222 = vmatpush1.msra.mxu0 %v1221
    %1223 = vmatprep.subr.mxu0 0.0
    %v1224 = vand.u32 %v709, 4294901760
    %v1225 = vsub.f32 %v709, %v1224
    %v1226 = vand.u32 %v1225, 4294901760
    %1227 = vmatpush1.msra.mxu0 %v1226
    %1228 = vmatprep.subr.mxu0 0.0
    %v1229 = vand.u32 %v710, 4294901760
    %v1230 = vsub.f32 %v710, %v1229
    %v1231 = vand.u32 %v1230, 4294901760
    %1232 = vmatpush1.msra.mxu0 %v1231
    %1233 = vmatprep.subr.mxu0 0.0
    %v1234 = vand.u32 %v711, 4294901760
    %v1235 = vsub.f32 %v711, %v1234
    %v1236 = vand.u32 %v1235, 4294901760
    %1237 = vmatpush1.msra.mxu0 %v1236
    %1238 = vmatprep.subr.mxu0 0.0
    %v1239 = vand.u32 %v728, 4294901760
    %v1240 = vsub.f32 %v728, %v1239
    %v1241 = vand.u32 %v1240, 4294901760
    %1242 = vmatpush1.msra.mxu0 %v1241
    %1243 = vmatprep.subr.mxu0 0.0
    %v1244 = vand.u32 %v729, 4294901760
    %v1245 = vsub.f32 %v729, %v1244
    %v1246 = vand.u32 %v1245, 4294901760
    %1247 = vmatpush1.msra.mxu0 %v1246
    %1248 = vmatprep.subr.mxu0 0.0
    %v1249 = vand.u32 %v730, 4294901760
    %v1250 = vsub.f32 %v730, %v1249
    %v1251 = vand.u32 %v1250, 4294901760
    %1252 = vmatpush1.msra.mxu0 %v1251
    %1253 = vmatprep.subr.mxu0 0.0
    %v1254 = vand.u32 %v731, 4294901760
    %v1255 = vsub.f32 %v731, %v1254
    %v1256 = vand.u32 %v1255, 4294901760
    %1257 = vmatpush1.msra.mxu0 %v1256
    %1258 = vmatprep.subr.mxu0 0.0
    %v1259 = vand.u32 %v748, 4294901760
    %v1260 = vsub.f32 %v748, %v1259
    %v1261 = vand.u32 %v1260, 4294901760
    %1262 = vmatpush1.msra.mxu0 %v1261
    %1263 = vmatprep.subr.mxu0 0.0
    %v1264 = vand.u32 %v749, 4294901760
    %v1265 = vsub.f32 %v749, %v1264
    %v1266 = vand.u32 %v1265, 4294901760
    %1267 = vmatpush1.msra.mxu0 %v1266
    %1268 = vmatprep.subr.mxu0 0.0
    %v1269 = vand.u32 %v750, 4294901760
    %v1270 = vsub.f32 %v750, %v1269
    %v1271 = vand.u32 %v1270, 4294901760
    %1272 = vmatpush1.msra.mxu0 %v1271
    %1273 = vmatprep.subr.mxu0 0.0
    %v1274 = vand.u32 %v751, 4294901760
    %v1275 = vsub.f32 %v751, %v1274
    %v1276 = vand.u32 %v1275, 4294901760
    %1277 = vmatpush1.msra.mxu0 %v1276
    %1278 = vmatprep.subr.mxu0 0.0
    %v1279 = vand.u32 %v768, 4294901760
    %v1280 = vsub.f32 %v768, %v1279
    %v1281 = vand.u32 %v1280, 4294901760
    %1282 = vmatpush1.msra.mxu0 %v1281
    %1283 = vmatprep.subr.mxu0 0.0
    %v1284 = vand.u32 %v769, 4294901760
    %v1285 = vsub.f32 %v769, %v1284
    %v1286 = vand.u32 %v1285, 4294901760
    %1287 = vmatpush1.msra.mxu0 %v1286
    %1288 = vmatprep.subr.mxu0 0.0
    %v1289 = vand.u32 %v770, 4294901760
    %v1290 = vsub.f32 %v770, %v1289
    %v1291 = vand.u32 %v1290, 4294901760
    %1292 = vmatpush1.msra.mxu0 %v1291
    %1293 = vmatprep.subr.mxu0 0.0
    %v1294 = vand.u32 %v771, 4294901760
    %v1295 = vsub.f32 %v771, %v1294
    %v1296 = vand.u32 %v1295, 4294901760
    %1297 = vmatpush1.msra.mxu0 %v1296
    %1298 = vmatprep.subr.mxu0 0.0
    %1299 = vmatpush1.msra.mxu0 0.0
    %1300 = vmatprep.subr.mxu0 0.0
    %1301 = vmatpush1.msra.mxu0 0.0
    %1302 = vmatprep.subr.mxu0 0.0
    %1303 = vmatpush1.msra.mxu0 0.0
    %1304 = vmatprep.subr.mxu0 0.0
    %1305 = vmatpush1.msra.mxu0 0.0
    %1306 = vmatprep.subr.mxu0 0.0
    %1307 = vmatpush1.msra.mxu0 0.0
    %1308 = vmatprep.subr.mxu0 0.0
    %1309 = vmatpush1.msra.mxu0 0.0
    %1310 = vmatprep.subr.mxu0 0.0
    %1311 = vmatpush1.msra.mxu0 0.0
    %1312 = vmatprep.subr.mxu0 0.0
    %1313 = vmatpush1.msra.mxu0 0.0
    %1314 = vmatprep.subr.mxu0 0.0
    %1315 = vmatpush1.msra.mxu0 0.0
    %1316 = vmatprep.subr.mxu0 0.0
    %1317 = vmatpush1.msra.mxu0 0.0
    %1318 = vmatprep.subr.mxu0 0.0
    %1319 = vmatpush1.msra.mxu0 0.0
    %1320 = vmatprep.subr.mxu0 0.0
    %1321 = vmatpush1.msra.mxu0 0.0
    %1322 = vmatprep.subr.mxu0 0.0
    %1323 = vmatpush1.msra.mxu0 0.0
    %1324 = vmatprep.subr.mxu0 0.0
    %1325 = vmatpush1.msra.mxu0 0.0
    %1326 = vmatprep.subr.mxu0 0.0
    %1327 = vmatpush1.msra.mxu0 0.0
    %1328 = vmatprep.subr.mxu0 0.0
    %1329 = vmatpush1.msra.mxu0 0.0
    %1330 = vmatprep.mubr.f32.mxu0 0.0
    %v1331 = vand.u32 %v772, 4294901760
    %1332 = vmatmul.mubr.f32.gmra.mrb[0].mxu0 %v1331
    %v1333 = vpop.f32.mrb[0].mxu0
    %v1334 = vadd.f32 %v1215, %v1333
    %v1335 = vpop.f32.mrb[0].mxu0
    %1336 = vdwg.mxu0
    %1337 = vmatprep.subr.mxu0 0.0
    %v1338 = vand.u32 %v708, 4294901760
    %1339 = vmatpush1.msra.mxu0 %v1338
    %1340 = vmatprep.subr.mxu0 0.0
    %v1341 = vand.u32 %v709, 4294901760
    %1342 = vmatpush1.msra.mxu0 %v1341
    %1343 = vmatprep.subr.mxu0 0.0
    %v1344 = vand.u32 %v710, 4294901760
    %1345 = vmatpush1.msra.mxu0 %v1344
    %1346 = vmatprep.subr.mxu0 0.0
    %v1347 = vand.u32 %v711, 4294901760
    %1348 = vmatpush1.msra.mxu0 %v1347
    %1349 = vmatprep.subr.mxu0 0.0
    %v1350 = vand.u32 %v728, 4294901760
    %1351 = vmatpush1.msra.mxu0 %v1350
    %1352 = vmatprep.subr.mxu0 0.0
    %v1353 = vand.u32 %v729, 4294901760
    %1354 = vmatpush1.msra.mxu0 %v1353
    %1355 = vmatprep.subr.mxu0 0.0
    %v1356 = vand.u32 %v730, 4294901760
    %1357 = vmatpush1.msra.mxu0 %v1356
    %1358 = vmatprep.subr.mxu0 0.0
    %v1359 = vand.u32 %v731, 4294901760
    %1360 = vmatpush1.msra.mxu0 %v1359
    %1361 = vmatprep.subr.mxu0 0.0
    %v1362 = vand.u32 %v748, 4294901760
    %1363 = vmatpush1.msra.mxu0 %v1362
    %1364 = vmatprep.subr.mxu0 0.0
    %v1365 = vand.u32 %v749, 4294901760
    %1366 = vmatpush1.msra.mxu0 %v1365
    %1367 = vmatprep.subr.mxu0 0.0
    %v1368 = vand.u32 %v750, 4294901760
    %1369 = vmatpush1.msra.mxu0 %v1368
    %1370 = vmatprep.subr.mxu0 0.0
    %v1371 = vand.u32 %v751, 4294901760
    %1372 = vmatpush1.msra.mxu0 %v1371
    %1373 = vmatprep.subr.mxu0 0.0
    %v1374 = vand.u32 %v768, 4294901760
    %1375 = vmatpush1.msra.mxu0 %v1374
    %1376 = vmatprep.subr.mxu0 0.0
    %v1377 = vand.u32 %v769, 4294901760
    %1378 = vmatpush1.msra.mxu0 %v1377
    %1379 = vmatprep.subr.mxu0 0.0
    %v1380 = vand.u32 %v770, 4294901760
    %1381 = vmatpush1.msra.mxu0 %v1380
    %1382 = vmatprep.subr.mxu0 0.0
    %v1383 = vand.u32 %v771, 4294901760
    %1384 = vmatpush1.msra.mxu0 %v1383
    %1385 = vmatprep.subr.mxu0 0.0
    %1386 = vmatpush1.msra.mxu0 0.0
    %1387 = vmatprep.subr.mxu0 0.0
    %1388 = vmatpush1.msra.mxu0 0.0
    %1389 = vmatprep.subr.mxu0 0.0
    %1390 = vmatpush1.msra.mxu0 0.0
    %1391 = vmatprep.subr.mxu0 0.0
    %1392 = vmatpush1.msra.mxu0 0.0
    %1393 = vmatprep.subr.mxu0 0.0
    %1394 = vmatpush1.msra.mxu0 0.0
    %1395 = vmatprep.subr.mxu0 0.0
    %1396 = vmatpush1.msra.mxu0 0.0
    %1397 = vmatprep.subr.mxu0 0.0
    %1398 = vmatpush1.msra.mxu0 0.0
    %1399 = vmatprep.subr.mxu0 0.0
    %1400 = vmatpush1.msra.mxu0 0.0
    %1401 = vmatprep.subr.mxu0 0.0
    %1402 = vmatpush1.msra.mxu0 0.0
    %1403 = vmatprep.subr.mxu0 0.0
    %1404 = vmatpush1.msra.mxu0 0.0
    %1405 = vmatprep.subr.mxu0 0.0
    %1406 = vmatpush1.msra.mxu0 0.0
    %1407 = vmatprep.subr.mxu0 0.0
    %1408 = vmatpush1.msra.mxu0 0.0
    %1409 = vmatprep.subr.mxu0 0.0
    %1410 = vmatpush1.msra.mxu0 0.0
    %1411 = vmatprep.subr.mxu0 0.0
    %1412 = vmatpush1.msra.mxu0 0.0
    %1413 = vmatprep.subr.mxu0 0.0
    %1414 = vmatpush1.msra.mxu0 0.0
    %1415 = vmatprep.subr.mxu0 0.0
    %1416 = vmatpush1.msra.mxu0 0.0
    %1417 = vmatprep.mubr.f32.mxu0 0.0
    %v1418 = vand.u32 %v772, 4294901760
    %1419 = vmatmul.mubr.f32.gmra.mrb[0].mxu0 %v1418
    %v1420 = vpop.f32.mrb[0].mxu0
    %v1421 = vadd.f32 %v1334, %v1420
    %v1422 = vpop.f32.mrb[0].mxu0
    %1423 = vdwg.mxu0
    %1424 = vst [vmem:[#allocation3] sm:$0x1] %v1421
    // Predicated region
    $region30: #{tpu_custom_call.1} parent=1 // pred_check
      _
    $region31: #{tpu_custom_call.1} parent=1 // pred_check_branch
      %1426 = sbr.rel (0) target = $region33
    $region32: #{tpu_custom_call.1} parent=1 // pred_region
      %s1428 = ssub.s32 16, 16
      %1429 = vsyncadd [#allocation4], %s1428
      %s1431 = sshll.u32 [#allocation3], 4
      %s1432 = int_to_ptr.vmem [resolvable:$true] %s1431
      %1434 = dma.vmem_to_hbm [thread:$0]  %s1432, 16, %s7, [#allocation4]
    $region33: #{tpu_custom_call.1} parent=1 // pred_fallthru
      _
    // Predicated region
    $region34: #{tpu_custom_call.1} parent=1 // pred_check
      _
    $region35: #{tpu_custom_call.1} parent=1 // pred_check_branch
      %1436 = sbr.rel (0) target = $region37
    $region36: #{tpu_custom_call.1} parent=1 // pred_region
      %1437 = dma.done [#allocation4], 16
    $region37: #{tpu_custom_call.1} parent=1 // pred_fallthru
      _
    %1438 = vsyncpa [#allocation4], 1

</llo_original>
